<compile_context>
chip_gen: v7x
topology: tpu7x:2x2x1
jax: 0.10.0
libtpu: 0.0.40
codegen_flags: <defaults>
</compile_context>

<pallas_src>
import jax
import jax.numpy as jnp
from jax.experimental import pallas as pl
from jax.experimental.pallas import tpu as pltpu

C_IN = 512       # Conv2d(512, 128, 1) / Conv2d(128, 512, 1)
C_MID = 128
NEG_SLOPE = 0.2  # LeakyReLU(0.2)


def _modulator_kernel(x_ref, m_ref, w1_ref, b1_ref, w3c_ref, b3_ref,
                      w2_ref, b2_ref, out_ref, imcol_ref):
    """fb frames/step: out = unsqueeze( y*sigmoid(y) ), y = conv3x3(leaky(squeeze(x+m)))."""
    fb, H, W, _ = x_ref.shape
    M = fb * H * W

    # l_x = x[:, :l_t] + m   (bf16 operands feed the MXU; accumulation in f32)
    a = (x_ref[...] + m_ref[...]).astype(jnp.bfloat16).reshape(M, C_IN)

    # squeeze: 1x1 conv == channel matmul; bias + LeakyReLU in f32
    t1 = jnp.dot(a, w1_ref[...], preferred_element_type=jnp.float32) + b1_ref[...]
    t1 = jnp.where(t1 >= 0, t1, NEG_SLOPE * t1)                     # (M, 128) f32
    t1 = t1.astype(jnp.bfloat16).reshape(fb, H, W, C_MID)

    # ---- 3x3 conv (padding=1) as 3 matmuls with K = 3*C_MID = 384 ----------
    # im2col scratch (fb, H+2, W, 384): channel block j holds the W-tap dj=j;
    # rows 0 and H+1 are the zero halo along H, so the three di taps below are
    # free major-dim slices.  t1 is written straight into the three 128-lane
    # blocks (no padw scratch / round trip).  Halo zeroing is per-step (tiny)
    # so the grid axis stays megacore-safe.
    zrow = jnp.zeros((fb, 1, W, 3 * C_MID), jnp.bfloat16)
    imcol_ref[:, 0:1, :, :] = zrow
    imcol_ref[:, H + 1:H + 2, :, :] = zrow
    zcol = jnp.zeros((fb, H, 1, C_MID), jnp.bfloat16)
    # dj = 0  ->  needs t1[.., w-1, ..], zero at w == 0
    imcol_ref[:, 1:H + 1, 0:1, 0:C_MID] = zcol
    imcol_ref[:, 1:H + 1, 1:W, 0:C_MID] = t1[:, :, 0:W - 1, :]
    # dj = 1  ->  t1 itself
    imcol_ref[:, 1:H + 1, :, C_MID:2 * C_MID] = t1
    # dj = 2  ->  needs t1[.., w+1, ..], zero at w == W-1
    imcol_ref[:, 1:H + 1, 0:W - 1, 2 * C_MID:3 * C_MID] = t1[:, :, 1:W, :]
    imcol_ref[:, 1:H + 1, W - 1:W, 2 * C_MID:3 * C_MID] = zcol

    acc = jnp.dot(imcol_ref[:, 0:H, :, :].reshape(M, 3 * C_MID), w3c_ref[0],
                  preferred_element_type=jnp.float32)
    for di in range(1, 3):
        patch = imcol_ref[:, di:di + H, :, :].reshape(M, 3 * C_MID)
        acc = acc + jnp.dot(patch, w3c_ref[di], preferred_element_type=jnp.float32)
    acc = acc + b3_ref[...]

    # confidence_score gating: y * sigmoid(y), in f32 (EUP)
    acc = acc * jax.nn.sigmoid(acc)

    # unsqueeze: 1x1 conv back to 512 channels
    o = jnp.dot(acc.astype(jnp.bfloat16), w2_ref[...],
                preferred_element_type=jnp.float32) + b2_ref[...]
    out_ref[...] = o.reshape(fb, H, W, C_IN).astype(out_ref.dtype)


def _pick_frames_per_step(l_t, hw, target_rows=256, max_rows=1024, min_steps=4):
    """Frames per grid step.

    Priorities (per perf review): keep the grid >= min(4, l_t) steps deep so
    BlockSpec double-buffering has something to overlap and both v7x TCs get
    work; prefer an even step count (v7x megacore split); then aim for
    >= target_rows matmul rows/step, capped at max_rows to bound VMEM.
    """
    min_steps = min(min_steps, l_t)
    divs = [d for d in range(1, l_t + 1) if l_t % d == 0]
    cands = [d for d in divs if l_t // d >= min_steps and d * hw <= max_rows]
    if not cands:
        return 1
    return max(cands,
               key=lambda d: (((l_t // d) % 2) == 0, d * hw >= target_rows, d))


def _vmem_limit_bytes(fb, H, W):
    """Conservative per-step VMEM working-set estimate (with 1.5x headroom)."""
    bf16, f32 = 2, 4
    rows = fb * H * W
    frame_blk = rows * C_IN * bf16
    io = 3 * 2 * frame_blk                                          # x, m, out (double-buffered)
    wgt = 2 * ((C_IN * C_MID + 9 * C_MID * C_MID + C_MID * C_IN) * bf16
               + (2 * C_MID + C_IN) * f32)                          # weights + biases
    scratch = fb * (H + 2) * W * 3 * C_MID * bf16                   # im2col
    temps = rows * (C_IN * bf16            # a
                    + 3 * C_MID * bf16     # im2col patch copies
                    + 2 * C_MID * f32      # t1 / acc
                    + C_IN * f32)          # o before cast
    est = io + wgt + scratch + temps
    return int(min(max(est * 3 // 2, 32 * 2 ** 20), 128 * 2 ** 20))


def modulator_forward(x, m, params):
    """x: (1, T, H, W, 512), m: (1, l_t, H, W, 512) -> x with first l_t frames modulated.

    x / m are expected in bf16 (MXU operand dtype).  Weights are pre-transposed
    relative to PyTorch Conv2d: w1 (in,out), w3 (ky,kx,in,out), w2 (in,out).
    NOTE: callers must donate x (see `modulator_forward_donated`) so the
    aliased output really reuses x's HBM buffer; frames [l_t, T) are never
    written by the kernel and pass through via that alias.
    """
    w1, b1, w3, b3, w2, b2 = params
    b, t, H, W, c = x.shape
    l_t = m.shape[1]
    assert b == 1 and c == C_IN               # module does .squeeze(0)
    assert m.shape[2:] == x.shape[2:]
    assert w3.shape == (3, 3, C_MID, C_MID)
    assert W >= 2                             # 3x3 conv halo slicing assumes W >= 2

    # Free reshapes only -- no dtype casts / copies of the big activations.
    x_r = x.reshape(t, H, W, C_IN)
    m_r = m.reshape(l_t, H, W, C_IN)

    # Weights -> bf16 once; biases stay f32 for the f32 epilogues.
    w1b = w1.astype(jnp.bfloat16)                                   # (512, 128)
    w2b = w2.astype(jnp.bfloat16)                                   # (128, 512)
    w3c = w3.reshape(3, 3 * C_MID, C_MID).astype(jnp.bfloat16)      # (3, 384, 128)
    b1r = b1.reshape(1, C_MID).astype(jnp.float32)
    b3r = b3.reshape(1, C_MID).astype(jnp.float32)
    b2r = b2.reshape(1, C_IN).astype(jnp.float32)

    fb = _pick_frames_per_step(l_t, H * W)
    grid = (l_t // fb,)

    frame_spec = pl.BlockSpec((fb, H, W, C_IN), lambda i: (i, 0, 0, 0))

    def full(shape):
        return pl.BlockSpec(shape, lambda i: tuple(0 for _ in shape))

    out = pl.pallas_call(
        _modulator_kernel,
        out_shape=jax.ShapeDtypeStruct((t, H, W, C_IN), x.dtype),
        grid_spec=pltpu.PrefetchScalarGridSpec(
            num_scalar_prefetch=0,
            grid=grid,
            in_specs=[
                frame_spec,                       # x frames (aliased with output)
                frame_spec,                       # m frames
                full((C_IN, C_MID)),              # squeeze W   (bf16)
                full((1, C_MID)),                 # squeeze b   (f32)
                full((3, 3 * C_MID, C_MID)),      # 3x3 W, im2col-packed (bf16)
                full((1, C_MID)),                 # 3x3 b       (f32)
                full((C_MID, C_IN)),              # unsqueeze W (bf16)
                full((1, C_IN)),                  # unsqueeze b (f32)
            ],
            out_specs=frame_spec,
            scratch_shapes=[
                pltpu.VMEM((fb, H + 2, W, 3 * C_MID), jnp.bfloat16),  # im2col (+H halo)
            ],
        ),
        # Kernel writes the first l_t frames in place; frames l_t..T-1 pass
        # through untouched via the aliased buffer (no wrapper-side copy).
        input_output_aliases={0: 0},
        compiler_params=pltpu.CompilerParams(
            dimension_semantics=("parallel",),        # frames independent -> v7x 2 TCs
            vmem_limit_bytes=_vmem_limit_bytes(fb, H, W)),
    )(x_r, m_r, w1b, b1r, w3c, b3r, w2b, b2r)

    return out.reshape(b, t, H, W, C_IN)


# Donated entry point: guarantees input_output_aliases={0:0} is a true HBM
# alias (no defensive copy of the whole (T,H,W,512) tensor by XLA).
modulator_forward_donated = jax.jit(modulator_forward, donate_argnums=(0,))


def _ref_forward(x, m, params):
    """Pure-JAX f32 reference with identical semantics (channels-last)."""
    w1, b1, w3, b3, w2, b2 = params
    l_t = m.shape[1]
    a = x[0, :l_t].astype(jnp.float32) + m[0].astype(jnp.float32)
    t1 = jnp.einsum('thwc,cd->thwd', a, w1) + b1
    t1 = jnp.where(t1 >= 0, t1, NEG_SLOPE * t1)
    H, W = t1.shape[1], t1.shape[2]
    tp = jnp.pad(t1, ((0, 0), (1, 1), (1, 1), (0, 0)))
    acc = jnp.zeros_like(t1) + b3
    for di in range(3):
        for dj in range(3):
            acc = acc + jnp.einsum('thwc,cd->thwd',
                                   tp[:, di:di + H, dj:dj + W], w3[di, dj])
    acc = acc * jax.nn.sigmoid(acc)
    o = jnp.einsum('thwc,cd->thwd', acc, w2) + b2
    return x.at[0, :l_t].set(o.astype(x.dtype))


def _init_params(key):
    ks = jax.random.split(key, 6)
    scale = 0.02
    w1 = scale * jax.random.normal(ks[0], (C_IN, C_MID), jnp.float32)          # squeeze (1x1)
    b1 = scale * jax.random.normal(ks[1], (C_MID,), jnp.float32)
    w3 = scale * jax.random.normal(ks[2], (3, 3, C_MID, C_MID), jnp.float32)   # (ky,kx,cin,cout)
    b3 = scale * jax.random.normal(ks[3], (C_MID,), jnp.float32)
    w2 = scale * jax.random.normal(ks[4], (C_MID, C_IN), jnp.float32)          # unsqueeze (1x1)
    b2 = scale * jax.random.normal(ks[5], (C_IN,), jnp.float32)
    return (w1, b1, w3, b3, w2, b2)


if __name__ == "__main__":
    key = jax.random.PRNGKey(0)
    kx, km, kp = jax.random.split(key, 3)

    B, T, L_T, H, W = 1, 8, 4, 8, 8
    x = jax.random.normal(kx, (B, T, H, W, C_IN), jnp.float32).astype(jnp.bfloat16)
    m = jax.random.normal(km, (B, L_T, H, W, C_IN), jnp.float32).astype(jnp.bfloat16)
    params = _init_params(kp)

    # f32 reference using the same bf16-rounded weight values the kernel sees.
    # Computed (and materialized) BEFORE the donated kernel call invalidates x.
    params_ref = tuple(p.astype(jnp.bfloat16).astype(jnp.float32) if p.ndim >= 2 else p
                       for p in params)
    ref = jax.block_until_ready(_ref_forward(x, m, params_ref))

    # Donated call: x's HBM buffer is reused for the output (true in-place).
    out = jax.block_until_ready(modulator_forward_donated(x, m, params))

    assert out.shape == (B, T, H, W, C_IN)
    assert jnp.allclose(out.astype(jnp.float32), ref.astype(jnp.float32),
                        rtol=5e-2, atol=1e-2), "mismatch vs reference"
    # untouched frames must pass through unchanged (aliased output buffer)
    assert jnp.array_equal(out[0, L_T:], ref[0, L_T:])

    print("KERNEL_OK")
</pallas_src>

<mosaic_0001>
module attributes {stable_mosaic.version = 11 : i64} {
  func.func @_modulator_kernel(%arg0: i32, %arg1: memref<1x8x8x512xbf16, #tpu.memory_space<vmem>>, %arg2: memref<1x8x8x512xbf16, #tpu.memory_space<vmem>>, %arg3: memref<512x128xbf16, #tpu.memory_space<vmem>>, %arg4: memref<1x128xf32, #tpu.memory_space<vmem>>, %arg5: memref<3x384x128xbf16, #tpu.memory_space<vmem>>, %arg6: memref<1x128xf32, #tpu.memory_space<vmem>>, %arg7: memref<128x512xbf16, #tpu.memory_space<vmem>>, %arg8: memref<1x512xf32, #tpu.memory_space<vmem>>, %arg9: memref<1x8x8x512xbf16, #tpu.memory_space<vmem>>, %arg10: memref<1x10x8x384xbf16, #tpu.memory_space<vmem>>) attributes {dimension_semantics = [#tpu.dimension_semantics<parallel>], iteration_bounds = array<i64: 4>, scalar_prefetch = 0 : i64, scratch_operands = 1 : i64, tpu.core_type = #tpu.core_type<tc>, window_params = [{transform_indices = @transform_0, window_bounds = array<i64: 1, 8, 8, 512>}, {transform_indices = @transform_1, window_bounds = array<i64: 1, 8, 8, 512>}, {pipeline_mode = #tpu.pipeline_mode<synchronous>, transform_indices = @transform_2, window_bounds = array<i64: 512, 128>}, {pipeline_mode = #tpu.pipeline_mode<synchronous>, transform_indices = @transform_3, window_bounds = array<i64: 1, 128>}, {pipeline_mode = #tpu.pipeline_mode<synchronous>, transform_indices = @transform_4, window_bounds = array<i64: 3, 384, 128>}, {pipeline_mode = #tpu.pipeline_mode<synchronous>, transform_indices = @transform_5, window_bounds = array<i64: 1, 128>}, {pipeline_mode = #tpu.pipeline_mode<synchronous>, transform_indices = @transform_6, window_bounds = array<i64: 128, 512>}, {pipeline_mode = #tpu.pipeline_mode<synchronous>, transform_indices = @transform_7, window_bounds = array<i64: 1, 512>}, {transform_indices = @transform_8, window_bounds = array<i64: 1, 8, 8, 512>}]} {
    %c0 = arith.constant 0 : index
    %c0_0 = arith.constant 0 : index
    %c0_1 = arith.constant 0 : index
    %c0_2 = arith.constant 0 : index
    %0 = vector.load %arg1[%c0, %c0_0, %c0_1, %c0_2] : memref<1x8x8x512xbf16, #tpu.memory_space<vmem>>, vector<1x8x8x512xbf16>
    %c0_3 = arith.constant 0 : index
    %c0_4 = arith.constant 0 : index
    %c0_5 = arith.constant 0 : index
    %c0_6 = arith.constant 0 : index
    %1 = vector.load %arg2[%c0_3, %c0_4, %c0_5, %c0_6] : memref<1x8x8x512xbf16, #tpu.memory_space<vmem>>, vector<1x8x8x512xbf16>
    %2 = arith.addf %0, %1 : vector<1x8x8x512xbf16>
    %3 = vector.shape_cast %2 : vector<1x8x8x512xbf16> to vector<64x512xbf16>
    %c0_7 = arith.constant 0 : index
    %c0_8 = arith.constant 0 : index
    %4 = vector.load %arg3[%c0_7, %c0_8] : memref<512x128xbf16, #tpu.memory_space<vmem>>, vector<512x128xbf16>
    %cst = arith.constant dense<0.000000e+00> : vector<64x128xf32>
    %5 = tpu.matmul %3, %4, %cst {dimension_numbers = #tpu.dot_dimension_numbers<[1], [0], [0], [1], [0, 0, 1, 1], [], []>} : vector<64x512xbf16>, vector<512x128xbf16>, vector<64x128xf32> -> vector<64x128xf32>
    %c0_9 = arith.constant 0 : index
    %c0_10 = arith.constant 0 : index
    %6 = vector.load %arg4[%c0_9, %c0_10] : memref<1x128xf32, #tpu.memory_space<vmem>>, vector<1x128xf32>
    %7 = vector.broadcast %6 : vector<1x128xf32> to vector<64x128xf32>
    %8 = arith.addf %5, %7 : vector<64x128xf32>
    %cst_11 = arith.constant 0.000000e+00 : f32
    %9 = vector.broadcast %cst_11 : f32 to vector<64x128xf32>
    %10 = arith.cmpf oge, %8, %9 : vector<64x128xf32>
    %cst_12 = arith.constant 2.000000e-01 : f32
    %11 = vector.broadcast %cst_12 : f32 to vector<64x128xf32>
    %12 = arith.mulf %11, %8 : vector<64x128xf32>
    %13 = arith.select %10, %8, %12 : vector<64x128xi1>, vector<64x128xf32>
    %14 = arith.truncf %13 : vector<64x128xf32> to vector<64x128xbf16>
    %15 = vector.shape_cast %14 : vector<64x128xbf16> to vector<1x8x8x128xbf16>
    %cst_13 = arith.constant 0.000000e+00 : bf16
    %16 = vector.broadcast %cst_13 : bf16 to vector<1x1x8x384xbf16>
    %c0_14 = arith.constant 0 : index
    %c0_15 = arith.constant 0 : index
    %c0_16 = arith.constant 0 : index
    %c0_17 = arith.constant 0 : index
    %17 = vector.load %arg10[%c0_14, %c0_15, %c0_16, %c0_17] : memref<1x10x8x384xbf16, #tpu.memory_space<vmem>>, vector<1x1x8x384xbf16>
    tpu.vector_store %arg10[%c0_14, %c0_15, %c0_16, %c0_17], %16 {strides = array<i32>} : memref<1x10x8x384xbf16, #tpu.memory_space<vmem>>, vector<1x1x8x384xbf16>,
    %c0_18 = arith.constant 0 : index
    %c9 = arith.constant 9 : index
    %c0_19 = arith.constant 0 : index
    %c0_20 = arith.constant 0 : index
    %18 = vector.load %arg10[%c0_18, %c9, %c0_19, %c0_20] : memref<1x10x8x384xbf16, #tpu.memory_space<vmem>>, vector<1x1x8x384xbf16>
    tpu.vector_store %arg10[%c0_18, %c9, %c0_19, %c0_20], %16 {strides = array<i32>} : memref<1x10x8x384xbf16, #tpu.memory_space<vmem>>, vector<1x1x8x384xbf16>,
    %cst_21 = arith.constant 0.000000e+00 : bf16
    %19 = vector.broadcast %cst_21 : bf16 to vector<1x8x1x128xbf16>
    %c0_22 = arith.constant 0 : index
    %c1 = arith.constant 1 : index
    %c0_23 = arith.constant 0 : index
    %c0_24 = arith.constant 0 : index
    %20 = vector.load %arg10[%c0_22, %c1, %c0_23, %c0_24] : memref<1x10x8x384xbf16, #tpu.memory_space<vmem>>, vector<1x8x1x128xbf16>
    tpu.vector_store %arg10[%c0_22, %c1, %c0_23, %c0_24], %19 {strides = array<i32>} : memref<1x10x8x384xbf16, #tpu.memory_space<vmem>>, vector<1x8x1x128xbf16>,
    %21 = vector.extract_strided_slice %15 {offsets = [0, 0, 0, 0], sizes = [1, 8, 7, 128], strides = [1, 1, 1, 1]} : vector<1x8x8x128xbf16> to vector<1x8x7x128xbf16>
    %c0_25 = arith.constant 0 : index
    %c1_26 = arith.constant 1 : index
    %c1_27 = arith.constant 1 : index
    %c0_28 = arith.constant 0 : index
    %22 = vector.load %arg10[%c0_25, %c1_26, %c1_27, %c0_28] : memref<1x10x8x384xbf16, #tpu.memory_space<vmem>>, vector<1x8x7x128xbf16>
    tpu.vector_store %arg10[%c0_25, %c1_26, %c1_27, %c0_28], %21 {strides = array<i32>} : memref<1x10x8x384xbf16, #tpu.memory_space<vmem>>, vector<1x8x7x128xbf16>,
    %c0_29 = arith.constant 0 : index
    %c1_30 = arith.constant 1 : index
    %c0_31 = arith.constant 0 : index
    %c128 = arith.constant 128 : index
    %23 = vector.load %arg10[%c0_29, %c1_30, %c0_31, %c128] : memref<1x10x8x384xbf16, #tpu.memory_space<vmem>>, vector<1x8x8x128xbf16>
    tpu.vector_store %arg10[%c0_29, %c1_30, %c0_31, %c128], %15 {strides = array<i32>} : memref<1x10x8x384xbf16, #tpu.memory_space<vmem>>, vector<1x8x8x128xbf16>,
    %24 = vector.extract_strided_slice %15 {offsets = [0, 0, 1, 0], sizes = [1, 8, 7, 128], strides = [1, 1, 1, 1]} : vector<1x8x8x128xbf16> to vector<1x8x7x128xbf16>
    %c0_32 = arith.constant 0 : index
    %c1_33 = arith.constant 1 : index
    %c0_34 = arith.constant 0 : index
    %c256 = arith.constant 256 : index
    %25 = vector.load %arg10[%c0_32, %c1_33, %c0_34, %c256] : memref<1x10x8x384xbf16, #tpu.memory_space<vmem>>, vector<1x8x7x128xbf16>
    tpu.vector_store %arg10[%c0_32, %c1_33, %c0_34, %c256], %24 {strides = array<i32>} : memref<1x10x8x384xbf16, #tpu.memory_space<vmem>>, vector<1x8x7x128xbf16>,
    %c0_35 = arith.constant 0 : index
    %c1_36 = arith.constant 1 : index
    %c7 = arith.constant 7 : index
    %c256_37 = arith.constant 256 : index
    %26 = vector.load %arg10[%c0_35, %c1_36, %c7, %c256_37] : memref<1x10x8x384xbf16, #tpu.memory_space<vmem>>, vector<1x8x1x128xbf16>
    tpu.vector_store %arg10[%c0_35, %c1_36, %c7, %c256_37], %19 {strides = array<i32>} : memref<1x10x8x384xbf16, #tpu.memory_space<vmem>>, vector<1x8x1x128xbf16>,
    %c0_38 = arith.constant 0 : index
    %c0_39 = arith.constant 0 : index
    %c0_40 = arith.constant 0 : index
    %c0_41 = arith.constant 0 : index
    %27 = vector.load %arg10[%c0_38, %c0_39, %c0_40, %c0_41] : memref<1x10x8x384xbf16, #tpu.memory_space<vmem>>, vector<1x8x8x384xbf16>
    %28 = vector.shape_cast %27 : vector<1x8x8x384xbf16> to vector<64x384xbf16>
    %c0_42 = arith.constant 0 : index
    %c0_43 = arith.constant 0 : index
    %c0_44 = arith.constant 0 : index
    %29 = vector.load %arg5[%c0_42, %c0_43, %c0_44] : memref<3x384x128xbf16, #tpu.memory_space<vmem>>, vector<1x384x128xbf16>
    %30 = vector.shape_cast %29 : vector<1x384x128xbf16> to vector<384x128xbf16>
    %cst_45 = arith.constant dense<0.000000e+00> : vector<64x128xf32>
    %31 = tpu.matmul %28, %30, %cst_45 {dimension_numbers = #tpu.dot_dimension_numbers<[1], [0], [0], [1], [0, 0, 1, 1], [], []>} : vector<64x384xbf16>, vector<384x128xbf16>, vector<64x128xf32> -> vector<64x128xf32>
    %c0_46 = arith.constant 0 : index
    %c1_47 = arith.constant 1 : index
    %c0_48 = arith.constant 0 : index
    %c0_49 = arith.constant 0 : index
    %32 = vector.load %arg10[%c0_46, %c1_47, %c0_48, %c0_49] : memref<1x10x8x384xbf16, #tpu.memory_space<vmem>>, vector<1x8x8x384xbf16>
    %33 = vector.shape_cast %32 : vector<1x8x8x384xbf16> to vector<64x384xbf16>
    %c1_50 = arith.constant 1 : index
    %c0_51 = arith.constant 0 : index
    %c0_52 = arith.constant 0 : index
    %34 = vector.load %arg5[%c1_50, %c0_51, %c0_52] : memref<3x384x128xbf16, #tpu.memory_space<vmem>>, vector<1x384x128xbf16>
    %35 = vector.shape_cast %34 : vector<1x384x128xbf16> to vector<384x128xbf16>
    %cst_53 = arith.constant dense<0.000000e+00> : vector<64x128xf32>
    %36 = tpu.matmul %33, %35, %cst_53 {dimension_numbers = #tpu.dot_dimension_numbers<[1], [0], [0], [1], [0, 0, 1, 1], [], []>} : vector<64x384xbf16>, vector<384x128xbf16>, vector<64x128xf32> -> vector<64x128xf32>
    %37 = arith.addf %31, %36 : vector<64x128xf32>
    %c0_54 = arith.constant 0 : index
    %c2 = arith.constant 2 : index
    %c0_55 = arith.constant 0 : index
    %c0_56 = arith.constant 0 : index
    %38 = vector.load %arg10[%c0_54, %c2, %c0_55, %c0_56] : memref<1x10x8x384xbf16, #tpu.memory_space<vmem>>, vector<1x8x8x384xbf16>
    %39 = vector.shape_cast %38 : vector<1x8x8x384xbf16> to vector<64x384xbf16>
    %c2_57 = arith.constant 2 : index
    %c0_58 = arith.constant 0 : index
    %c0_59 = arith.constant 0 : index
    %40 = vector.load %arg5[%c2_57, %c0_58, %c0_59] : memref<3x384x128xbf16, #tpu.memory_space<vmem>>, vector<1x384x128xbf16>
    %41 = vector.shape_cast %40 : vector<1x384x128xbf16> to vector<384x128xbf16>
    %cst_60 = arith.constant dense<0.000000e+00> : vector<64x128xf32>
    %42 = tpu.matmul %39, %41, %cst_60 {dimension_numbers = #tpu.dot_dimension_numbers<[1], [0], [0], [1], [0, 0, 1, 1], [], []>} : vector<64x384xbf16>, vector<384x128xbf16>, vector<64x128xf32> -> vector<64x128xf32>
    %43 = arith.addf %37, %42 : vector<64x128xf32>
    %c0_61 = arith.constant 0 : index
    %c0_62 = arith.constant 0 : index
    %44 = vector.load %arg6[%c0_61, %c0_62] : memref<1x128xf32, #tpu.memory_space<vmem>>, vector<1x128xf32>
    %45 = vector.broadcast %44 : vector<1x128xf32> to vector<64x128xf32>
    %46 = arith.addf %43, %45 : vector<64x128xf32>
    %47 = arith.negf %46 : vector<64x128xf32>
    %48 = math.exp %47 : vector<64x128xf32>
    %cst_63 = arith.constant 1.000000e+00 : f32
    %49 = vector.broadcast %cst_63 : f32 to vector<64x128xf32>
    %50 = arith.addf %49, %48 : vector<64x128xf32>
    %51 = arith.divf %49, %50 : vector<64x128xf32>
    %52 = arith.mulf %46, %51 : vector<64x128xf32>
    %53 = arith.truncf %52 : vector<64x128xf32> to vector<64x128xbf16>
    %c0_64 = arith.constant 0 : index
    %c0_65 = arith.constant 0 : index
    %54 = vector.load %arg7[%c0_64, %c0_65] : memref<128x512xbf16, #tpu.memory_space<vmem>>, vector<128x512xbf16>
    %cst_66 = arith.constant dense<0.000000e+00> : vector<64x512xf32>
    %55 = tpu.matmul %53, %54, %cst_66 {dimension_numbers = #tpu.dot_dimension_numbers<[1], [0], [0], [1], [0, 0, 1, 1], [], []>} : vector<64x128xbf16>, vector<128x512xbf16>, vector<64x512xf32> -> vector<64x512xf32>
    %c0_67 = arith.constant 0 : index
    %c0_68 = arith.constant 0 : index
    %56 = vector.load %arg8[%c0_67, %c0_68] : memref<1x512xf32, #tpu.memory_space<vmem>>, vector<1x512xf32>
    %57 = vector.broadcast %56 : vector<1x512xf32> to vector<64x512xf32>
    %58 = arith.addf %55, %57 : vector<64x512xf32>
    %59 = vector.shape_cast %58 : vector<64x512xf32> to vector<1x8x8x512xf32>
    %60 = arith.truncf %59 : vector<1x8x8x512xf32> to vector<1x8x8x512xbf16>
    %c0_69 = arith.constant 0 : index
    %c0_70 = arith.constant 0 : index
    %c0_71 = arith.constant 0 : index
    %c0_72 = arith.constant 0 : index
    %61 = vector.load %arg9[%c0_69, %c0_70, %c0_71, %c0_72] : memref<1x8x8x512xbf16, #tpu.memory_space<vmem>>, vector<1x8x8x512xbf16>
    tpu.vector_store %arg9[%c0_69, %c0_70, %c0_71, %c0_72], %60 {strides = array<i32>} : memref<1x8x8x512xbf16, #tpu.memory_space<vmem>>, vector<1x8x8x512xbf16>,
    return
  }
  func.func @transform_0(%arg0: i32) -> (i32, i32, i32, i32) {
    %c0_i32 = arith.constant 0 : i32
    %c0_i32_0 = arith.constant 0 : i32
    %c0_i32_1 = arith.constant 0 : i32
    %c0_i32_2 = arith.constant 0 : i32
    return %arg0, %c0_i32, %c0_i32_0, %c0_i32_1 : i32, i32, i32, i32
  }
  func.func @transform_1(%arg0: i32) -> (i32, i32, i32, i32) {
    %c0_i32 = arith.constant 0 : i32
    %c0_i32_0 = arith.constant 0 : i32
    %c0_i32_1 = arith.constant 0 : i32
    %c0_i32_2 = arith.constant 0 : i32
    return %arg0, %c0_i32, %c0_i32_0, %c0_i32_1 : i32, i32, i32, i32
  }
  func.func @transform_2(%arg0: i32) -> (i32, i32) {
    %c0_i32 = arith.constant 0 : i32
    %c0_i32_0 = arith.constant 0 : i32
    %c0_i32_1 = arith.constant 0 : i32
    return %c0_i32, %c0_i32_0 : i32, i32
  }
  func.func @transform_3(%arg0: i32) -> (i32, i32) {
    %c0_i32 = arith.constant 0 : i32
    %c0_i32_0 = arith.constant 0 : i32
    %c0_i32_1 = arith.constant 0 : i32
    return %c0_i32, %c0_i32_0 : i32, i32
  }
  func.func @transform_4(%arg0: i32) -> (i32, i32, i32) {
    %c0_i32 = arith.constant 0 : i32
    %c0_i32_0 = arith.constant 0 : i32
    %c0_i32_1 = arith.constant 0 : i32
    %c0_i32_2 = arith.constant 0 : i32
    return %c0_i32, %c0_i32_0, %c0_i32_1 : i32, i32, i32
  }
  func.func @transform_5(%arg0: i32) -> (i32, i32) {
    %c0_i32 = arith.constant 0 : i32
    %c0_i32_0 = arith.constant 0 : i32
    %c0_i32_1 = arith.constant 0 : i32
    return %c0_i32, %c0_i32_0 : i32, i32
  }
  func.func @transform_6(%arg0: i32) -> (i32, i32) {
    %c0_i32 = arith.constant 0 : i32
    %c0_i32_0 = arith.constant 0 : i32
    %c0_i32_1 = arith.constant 0 : i32
    return %c0_i32, %c0_i32_0 : i32, i32
  }
  func.func @transform_7(%arg0: i32) -> (i32, i32) {
    %c0_i32 = arith.constant 0 : i32
    %c0_i32_0 = arith.constant 0 : i32
    %c0_i32_1 = arith.constant 0 : i32
    return %c0_i32, %c0_i32_0 : i32, i32
  }
  func.func @transform_8(%arg0: i32) -> (i32, i32, i32, i32) {
    %c0_i32 = arith.constant 0 : i32
    %c0_i32_0 = arith.constant 0 : i32
    %c0_i32_1 = arith.constant 0 : i32
    %c0_i32_2 = arith.constant 0 : i32
    return %arg0, %c0_i32, %c0_i32_0, %c0_i32_1 : i32, i32, i32, i32
  }
}

</mosaic_0001>

<llo_original>
// kernel: modulator_forward.1
$region0: #{modulator_forward.1}
  #allocation0 [shape = 'u32[]', space=smem, size = 0x4, offset = 0x4, fixed_abs, tag = 'smem constant byte address 0x4 - core index']
  #allocation1 [shape = 'u32[144,128]{1,0:T(1,128)}', space=vmem, size = 0x12000, scoped, tag = 'internal scratch']
  #allocation2 [shape = 'bf16[1,10,8,384]{3,2,1,0:T(8,128)(2,1)}', space=vmem, size = 0xf000, scoped, tag = 'scratch operand']
  %s0 = inlined_call_operand.vmem [shape: bf16[8,8,8,512], index: 0, kind: input, shape index: {}, may-alias: {0,8}]
  %s1 = inlined_call_operand.vmem [shape: bf16[4,8,8,512], index: 1, kind: input, shape index: {}]
  %s2 = inlined_call_operand.vmem [shape: bf16[512,128], index: 2, kind: input, shape index: {}]
  %s3 = inlined_call_operand.vmem [shape: f32[1,128], index: 3, kind: input, shape index: {}]
  %s4 = inlined_call_operand.vmem [shape: bf16[3,384,128], index: 4, kind: input, shape index: {}]
  %s5 = inlined_call_operand.vmem [shape: f32[1,128], index: 5, kind: input, shape index: {}]
  %s6 = inlined_call_operand.vmem [shape: bf16[128,512], index: 6, kind: input, shape index: {}]
  %s7 = inlined_call_operand.vmem [shape: f32[1,512], index: 7, kind: input, shape index: {}]
  %s8 = inlined_call_operand.vmem [shape: bf16[8,8,8,512], index: 8, kind: output, shape index: {}, may-alias: {0,8}]
  %s9 = sld [smem:[#allocation0]]
  $region65: #{modulator_forward.1} parent=0
    _
  %s11 = ssub.s32 1, %s9
  %s12 = scalar_select 0, %s11, %s9
  loop: start=0, step=1, limit=6
  $region2: #{modulator_forward.1} parent=0 // loop_pre_header
    _
  $region3: #{modulator_forward.1} parent=0 // loop_header
    %s14 = sphi 0, %s18
    %p15 = scmp.ge.s32.totalorder %s14, 6
    %s24 = sphi 0, %s26
    %s27 = sphi 0, %s24
    %s28 = sphi 0, %s27
    %s44 = sphi 0, %s28
    %s50 = sphi 0, %s52
    %s53 = sphi 0, %s50
    %s54 = sphi 0, %s53
    %s70 = sphi 0, %s54
    %s74 = sphi 0, %s74
    %s76 = sphi 0, %s74
    %s77 = sphi 0, %s76
    %s91 = sphi 0, %s77
    %s95 = sphi 0, %s95
    %s97 = sphi 0, %s95
    %s98 = sphi 0, %s97
    %s112 = sphi 0, %s98
    %s116 = sphi 0, %s116
    %s118 = sphi 0, %s116
    %s119 = sphi 0, %s118
    %s133 = sphi 0, %s119
    %s137 = sphi 0, %s137
    %s139 = sphi 0, %s137
    %s140 = sphi 0, %s139
    %s154 = sphi 0, %s140
    %s158 = sphi 0, %s158
    %s160 = sphi 0, %s158
    %s161 = sphi 0, %s160
    %s175 = sphi 0, %s161
    %s179 = sphi 0, %s179
    %s181 = sphi 0, %s179
    %s182 = sphi 0, %s181
    %s196 = sphi 0, %s182
    %s202 = sphi 0, %s204
    %s205 = sphi 0, %s202
    %s206 = sphi 0, %s205
    %s222 = sphi 0, %s206
  $region4: #{modulator_forward.1} parent=0 // loop_header_branch
    %17 = sbr.rel (%p15) target = $region8
  $region5: #{modulator_forward.1} parent=0 // loop_body
    %s19 = ssub.s32 %s14, 1
    %s20 = ssub.s32 %s14, 2
    %s21 = sadd.s32 %s14, 1
    %s22 = ssub.s32 %s14, %s21
    %p23 = scmp.eq.s32.totalorder %s22, 0
    %s25 = sadd.s32 %s24, 1
    %s26 = scalar_select %p23, %s24, %s25
    %p29 = pneg %p23
    %p30 = scmp.eq.s32.totalorder %s14, 3
    %p31 = por %p29, %p30
    %p32 = scmp.ne.s32.totalorder %s24, %s27
    %p33 = scmp.eq.s32.totalorder %s14, 0
    %p34 = por %p32, %p33
    %p35 = scmp.ne.s32.totalorder %s24, %s27
    %p36 = scmp.eq.s32.totalorder %s19, 3
    %p37 = por %p35, %p36
    %p38 = scmp.ne.s32.totalorder %s27, %s28
    %p39 = scmp.eq.s32.totalorder %s19, 0
    %p40 = por %p38, %p39
    %p41 = scmp.ne.s32.totalorder %s27, %s28
    %p42 = scmp.eq.s32.totalorder %s20, 3
    %p43 = por %p41, %p42
    %p45 = scmp.ne.s32.totalorder %s28, %s44
    %p46 = scmp.eq.s32.totalorder %s20, 0
    %p47 = por %p45, %p46
    %s48 = ssub.s32 %s14, %s21
    %p49 = scmp.eq.s32.totalorder %s48, 0
    %s51 = sadd.s32 %s50, 1
    %s52 = scalar_select %p49, %s50, %s51
    %p55 = pneg %p49
    %p56 = scmp.eq.s32.totalorder %s14, 3
    %p57 = por %p55, %p56
    %p58 = scmp.ne.s32.totalorder %s50, %s53
    %p59 = scmp.eq.s32.totalorder %s14, 0
    %p60 = por %p58, %p59
    %p61 = scmp.ne.s32.totalorder %s50, %s53
    %p62 = scmp.eq.s32.totalorder %s19, 3
    %p63 = por %p61, %p62
    %p64 = scmp.ne.s32.totalorder %s53, %s54
    %p65 = scmp.eq.s32.totalorder %s19, 0
    %p66 = por %p64, %p65
    %p67 = scmp.ne.s32.totalorder %s53, %s54
    %p68 = scmp.eq.s32.totalorder %s20, 3
    %p69 = por %p67, %p68
    %p71 = scmp.ne.s32.totalorder %s54, %s70
    %p72 = scmp.eq.s32.totalorder %s20, 0
    %p73 = por %p71, %p72
    %s75 = sadd.s32 %s74, 1
    %p78 = scmp.eq.s32.totalorder %s14, 3
    %p79 = scmp.ne.s32.totalorder %s74, %s76
    %p80 = scmp.eq.s32.totalorder %s14, 0
    %p81 = por %p79, %p80
    %p82 = scmp.ne.s32.totalorder %s74, %s76
    %p83 = scmp.eq.s32.totalorder %s19, 3
    %p84 = por %p82, %p83
    %p85 = scmp.ne.s32.totalorder %s76, %s77
    %p86 = scmp.eq.s32.totalorder %s19, 0
    %p87 = por %p85, %p86
    %p88 = scmp.ne.s32.totalorder %s76, %s77
    %p89 = scmp.eq.s32.totalorder %s20, 3
    %p90 = por %p88, %p89
    %p92 = scmp.ne.s32.totalorder %s77, %s91
    %p93 = scmp.eq.s32.totalorder %s20, 0
    %p94 = por %p92, %p93
    %s96 = sadd.s32 %s95, 1
    %p99 = scmp.eq.s32.totalorder %s14, 3
    %p100 = scmp.ne.s32.totalorder %s95, %s97
    %p101 = scmp.eq.s32.totalorder %s14, 0
    %p102 = por %p100, %p101
    %p103 = scmp.ne.s32.totalorder %s95, %s97
    %p104 = scmp.eq.s32.totalorder %s19, 3
    %p105 = por %p103, %p104
    %p106 = scmp.ne.s32.totalorder %s97, %s98
    %p107 = scmp.eq.s32.totalorder %s19, 0
    %p108 = por %p106, %p107
    %p109 = scmp.ne.s32.totalorder %s97, %s98
    %p110 = scmp.eq.s32.totalorder %s20, 3
    %p111 = por %p109, %p110
    %p113 = scmp.ne.s32.totalorder %s98, %s112
    %p114 = scmp.eq.s32.totalorder %s20, 0
    %p115 = por %p113, %p114
    %s117 = sadd.s32 %s116, 1
    %p120 = scmp.eq.s32.totalorder %s14, 3
    %p121 = scmp.ne.s32.totalorder %s116, %s118
    %p122 = scmp.eq.s32.totalorder %s14, 0
    %p123 = por %p121, %p122
    %p124 = scmp.ne.s32.totalorder %s116, %s118
    %p125 = scmp.eq.s32.totalorder %s19, 3
    %p126 = por %p124, %p125
    %p127 = scmp.ne.s32.totalorder %s118, %s119
    %p128 = scmp.eq.s32.totalorder %s19, 0
    %p129 = por %p127, %p128
    %p130 = scmp.ne.s32.totalorder %s118, %s119
    %p131 = scmp.eq.s32.totalorder %s20, 3
    %p132 = por %p130, %p131
    %p134 = scmp.ne.s32.totalorder %s119, %s133
    %p135 = scmp.eq.s32.totalorder %s20, 0
    %p136 = por %p134, %p135
    %s138 = sadd.s32 %s137, 1
    %p141 = scmp.eq.s32.totalorder %s14, 3
    %p142 = scmp.ne.s32.totalorder %s137, %s139
    %p143 = scmp.eq.s32.totalorder %s14, 0
    %p144 = por %p142, %p143
    %p145 = scmp.ne.s32.totalorder %s137, %s139
    %p146 = scmp.eq.s32.totalorder %s19, 3
    %p147 = por %p145, %p146
    %p148 = scmp.ne.s32.totalorder %s139, %s140
    %p149 = scmp.eq.s32.totalorder %s19, 0
    %p150 = por %p148, %p149
    %p151 = scmp.ne.s32.totalorder %s139, %s140
    %p152 = scmp.eq.s32.totalorder %s20, 3
    %p153 = por %p151, %p152
    %p155 = scmp.ne.s32.totalorder %s140, %s154
    %p156 = scmp.eq.s32.totalorder %s20, 0
    %p157 = por %p155, %p156
    %s159 = sadd.s32 %s158, 1
    %p162 = scmp.eq.s32.totalorder %s14, 3
    %p163 = scmp.ne.s32.totalorder %s158, %s160
    %p164 = scmp.eq.s32.totalorder %s14, 0
    %p165 = por %p163, %p164
    %p166 = scmp.ne.s32.totalorder %s158, %s160
    %p167 = scmp.eq.s32.totalorder %s19, 3
    %p168 = por %p166, %p167
    %p169 = scmp.ne.s32.totalorder %s160, %s161
    %p170 = scmp.eq.s32.totalorder %s19, 0
    %p171 = por %p169, %p170
    %p172 = scmp.ne.s32.totalorder %s160, %s161
    %p173 = scmp.eq.s32.totalorder %s20, 3
    %p174 = por %p172, %p173
    %p176 = scmp.ne.s32.totalorder %s161, %s175
    %p177 = scmp.eq.s32.totalorder %s20, 0
    %p178 = por %p176, %p177
    %s180 = sadd.s32 %s179, 1
    %p183 = scmp.eq.s32.totalorder %s14, 3
    %p184 = scmp.ne.s32.totalorder %s179, %s181
    %p185 = scmp.eq.s32.totalorder %s14, 0
    %p186 = por %p184, %p185
    %p187 = scmp.ne.s32.totalorder %s179, %s181
    %p188 = scmp.eq.s32.totalorder %s19, 3
    %p189 = por %p187, %p188
    %p190 = scmp.ne.s32.totalorder %s181, %s182
    %p191 = scmp.eq.s32.totalorder %s19, 0
    %p192 = por %p190, %p191
    %p193 = scmp.ne.s32.totalorder %s181, %s182
    %p194 = scmp.eq.s32.totalorder %s20, 3
    %p195 = por %p193, %p194
    %p197 = scmp.ne.s32.totalorder %s182, %s196
    %p198 = scmp.eq.s32.totalorder %s20, 0
    %p199 = por %p197, %p198
    %s200 = ssub.s32 %s14, %s21
    %p201 = scmp.eq.s32.totalorder %s200, 0
    %s203 = sadd.s32 %s202, 1
    %s204 = scalar_select %p201, %s202, %s203
    %p207 = pneg %p201
    %p208 = scmp.eq.s32.totalorder %s14, 3
    %p209 = por %p207, %p208
    %p210 = scmp.ne.s32.totalorder %s202, %s205
    %p211 = scmp.eq.s32.totalorder %s14, 0
    %p212 = por %p210, %p211
    %p213 = scmp.ne.s32.totalorder %s202, %s205
    %p214 = scmp.eq.s32.totalorder %s19, 3
    %p215 = por %p213, %p214
    %p216 = scmp.ne.s32.totalorder %s205, %s206
    %p217 = scmp.eq.s32.totalorder %s19, 0
    %p218 = por %p216, %p217
    %p219 = scmp.ne.s32.totalorder %s205, %s206
    %p220 = scmp.eq.s32.totalorder %s20, 3
    %p221 = por %p219, %p220
    %p223 = scmp.ne.s32.totalorder %s206, %s222
    %p224 = scmp.eq.s32.totalorder %s20, 0
    %p225 = por %p223, %p224
    %p226 = scmp.le.s32.totalorder 1, %s14
    %p227 = scmp.lt.s32.totalorder %s14, 5
    %p228 = pnand %p226, %p227
    %p229 = pneg %p228
    // Predicated region
    $region9: #{modulator_forward.1} parent=5 // pred_check
      _
    $region10: #{modulator_forward.1} parent=5 // pred_check_branch
      %231 = sbr.rel (%p228) target = $region12
    $region11: #{modulator_forward.1} parent=5 // pred_region
      %s232 = ssub.s32 %s14, 1
      // Predicated region
      $region13: #{modulator_forward.1} parent=11 // pred_check
        %p233 = pneg %p87
      $region14: #{modulator_forward.1} parent=11 // pred_check_branch
        %235 = sbr.rel (%p233) target = $region16
      $region15: #{modulator_forward.1} parent=11 // pred_region
        _
      $region16: #{modulator_forward.1} parent=11 // pred_fallthru
        _
      // Predicated region
      $region17: #{modulator_forward.1} parent=11 // pred_check
        %p236 = pneg %p108
      $region18: #{modulator_forward.1} parent=11 // pred_check_branch
        %238 = sbr.rel (%p236) target = $region20
      $region19: #{modulator_forward.1} parent=11 // pred_region
        _
      $region20: #{modulator_forward.1} parent=11 // pred_fallthru
        _
      // Predicated region
      $region21: #{modulator_forward.1} parent=11 // pred_check
        %p239 = pneg %p129
      $region22: #{modulator_forward.1} parent=11 // pred_check_branch
        %241 = sbr.rel (%p239) target = $region24
      $region23: #{modulator_forward.1} parent=11 // pred_region
        _
      $region24: #{modulator_forward.1} parent=11 // pred_fallthru
        _
      // Predicated region
      $region25: #{modulator_forward.1} parent=11 // pred_check
        %p242 = pneg %p150
      $region26: #{modulator_forward.1} parent=11 // pred_check_branch
        %244 = sbr.rel (%p242) target = $region28
      $region27: #{modulator_forward.1} parent=11 // pred_region
        _
      $region28: #{modulator_forward.1} parent=11 // pred_fallthru
        _
      // Predicated region
      $region29: #{modulator_forward.1} parent=11 // pred_check
        %p245 = pneg %p171
      $region30: #{modulator_forward.1} parent=11 // pred_check_branch
        %247 = sbr.rel (%p245) target = $region32
      $region31: #{modulator_forward.1} parent=11 // pred_region
        _
      $region32: #{modulator_forward.1} parent=11 // pred_fallthru
        _
      // Predicated region
      $region33: #{modulator_forward.1} parent=11 // pred_check
        %p248 = pneg %p192
      $region34: #{modulator_forward.1} parent=11 // pred_check_branch
        %250 = sbr.rel (%p248) target = $region36
      $region35: #{modulator_forward.1} parent=11 // pred_region
        _
      $region36: #{modulator_forward.1} parent=11 // pred_fallthru
        _
    $region12: #{modulator_forward.1} parent=5 // pred_fallthru
      _
    %p251 = scmp.lt.s32.totalorder %s14, 4
    // Predicated region
    $region37: #{modulator_forward.1} parent=5 // pred_check
      %p252 = pneg %p251
    $region38: #{modulator_forward.1} parent=5 // pred_check_branch
      %254 = sbr.rel (%p252) target = $region40
    $region39: #{modulator_forward.1} parent=5 // pred_region
      // Predicated region
      $region41: #{modulator_forward.1} parent=39 // pred_check
        %p255 = pneg %p34
      $region42: #{modulator_forward.1} parent=39 // pred_check_branch
        %257 = sbr.rel (%p255) target = $region44
      $region43: #{modulator_forward.1} parent=39 // pred_region
        %p258 = scmp.lt.s32.totalorder %s14, 7
        %s259 = scalar_select %p258, %s14, 7
        %s260 = smul.addr %s259, 32
        %s261 = smul.addr %s260, 4
        %s262 = scalar_lea.vmem %s0, %s261
      $region44: #{modulator_forward.1} parent=39 // pred_fallthru
        _
      // Predicated region
      $region45: #{modulator_forward.1} parent=39 // pred_check
        %p263 = pneg %p60
      $region46: #{modulator_forward.1} parent=39 // pred_check_branch
        %265 = sbr.rel (%p263) target = $region48
      $region47: #{modulator_forward.1} parent=39 // pred_region
        %p266 = scmp.lt.s32.totalorder %s14, 3
        %s267 = scalar_select %p266, %s14, 3
        %s268 = smul.addr %s267, 32
        %s269 = smul.addr %s268, 4
        %s270 = scalar_lea.vmem %s1, %s269
      $region48: #{modulator_forward.1} parent=39 // pred_fallthru
        _
    $region40: #{modulator_forward.1} parent=5 // pred_fallthru
      _
    %p271 = scmp.le.s32.totalorder 1, %s14
    %p272 = scmp.lt.s32.totalorder %s14, 5
    %p273 = pnand %p271, %p272
    %p274 = pneg %p273
    // Predicated region
    $region49: #{modulator_forward.1} parent=5 // pred_check
      _
    $region50: #{modulator_forward.1} parent=5 // pred_check_branch
      %276 = sbr.rel (%p273) target = $region52
    $region51: #{modulator_forward.1} parent=5 // pred_region
      %s277 = ssub.s32 %s14, 1
      %p278 = scmp.lt.s32.totalorder %s19, 7
      %s279 = scalar_select %p278, %s19, 7
      %s280 = smul.addr %s279, 32
      %s281 = smul.addr %s280, 4
      %s282 = scalar_lea.vmem %s0, %s281
      %p283 = pneg %p40
      %p284 = pneg %p37
      %p285 = scmp.lt.s32.totalorder %s19, 3
      %s286 = scalar_select %p285, %s19, 3
      %s287 = smul.addr %s286, 32
      %s288 = smul.addr %s287, 4
      %s289 = scalar_lea.vmem %s1, %s288
      %p290 = pneg %p66
      %p291 = pneg %p63
      %p292 = pneg %p87
      %p293 = pneg %p84
      %p294 = pneg %p108
      %p295 = pneg %p105
      %p296 = pneg %p129
      %p297 = pneg %p126
      %p298 = pneg %p150
      %p299 = pneg %p147
      %p300 = pneg %p171
      %p301 = pneg %p168
      %p302 = pneg %p192
      %p303 = pneg %p189
      %p304 = pneg %p218
      %p305 = pneg %p215
      %p306 = scmp.lt.s32.totalorder %s19, 7
      %s307 = scalar_select %p306, %s19, 7
      %s308 = smul.addr %s307, 32
      %s309 = smul.addr %s308, 4
      %s310 = scalar_lea.vmem %s8, %s309
      %p311 = scmp.lt.s32.totalorder %s19, 7
      %s312 = scalar_select %p311, %s19, 7
      %s313 = smul.addr %s312, 32
      %s314 = smul.addr %s313, 4
      %s315 = scalar_lea.vmem %s0, %s314
      %p316 = scmp.lt.s32.totalorder %s19, 3
      %s317 = scalar_select %p316, %s19, 3
      %s318 = smul.addr %s317, 32
      %s319 = smul.addr %s318, 4
      %s320 = scalar_lea.vmem %s1, %s319
      %p321 = scmp.lt.s32.totalorder %s19, 7
      %s322 = scalar_select %p321, %s19, 7
      %s323 = smul.addr %s322, 32
      %s324 = smul.addr %s323, 4
      %s325 = scalar_lea.vmem %s8, %s324
      %v327 = vld [vmem:[%s315] sm:$0xff]
      %v328 = vld [vmem:[%s315 + $0x8] sm:$0xff]
      %v329 = vld [vmem:[%s315 + $0x10] sm:$0xff]
      %v330 = vld [vmem:[%s315 + $0x18] sm:$0xff]
      %v331 = vld [vmem:[%s315 + $0x20] sm:$0xff]
      %v332 = vld [vmem:[%s315 + $0x28] sm:$0xff]
      %v333 = vld [vmem:[%s315 + $0x30] sm:$0xff]
      %v334 = vld [vmem:[%s315 + $0x38] sm:$0xff]
      %v335 = vld [vmem:[%s315 + $0x40] sm:$0xff]
      %v336 = vld [vmem:[%s315 + $0x48] sm:$0xff]
      %v337 = vld [vmem:[%s315 + $0x50] sm:$0xff]
      %v338 = vld [vmem:[%s315 + $0x58] sm:$0xff]
      %v339 = vld [vmem:[%s315 + $0x60] sm:$0xff]
      %v340 = vld [vmem:[%s315 + $0x68] sm:$0xff]
      %v341 = vld [vmem:[%s315 + $0x70] sm:$0xff]
      %v342 = vld [vmem:[%s315 + $0x78] sm:$0xff]
      %v343 = vld [vmem:[%s320] sm:$0xff]
      %v344 = vld [vmem:[%s320 + $0x8] sm:$0xff]
      %v345 = vld [vmem:[%s320 + $0x10] sm:$0xff]
      %v346 = vld [vmem:[%s320 + $0x18] sm:$0xff]
      %v347 = vld [vmem:[%s320 + $0x20] sm:$0xff]
      %v348 = vld [vmem:[%s320 + $0x28] sm:$0xff]
      %v349 = vld [vmem:[%s320 + $0x30] sm:$0xff]
      %v350 = vld [vmem:[%s320 + $0x38] sm:$0xff]
      %v351 = vld [vmem:[%s320 + $0x40] sm:$0xff]
      %v352 = vld [vmem:[%s320 + $0x48] sm:$0xff]
      %v353 = vld [vmem:[%s320 + $0x50] sm:$0xff]
      %v354 = vld [vmem:[%s320 + $0x58] sm:$0xff]
      %v355 = vld [vmem:[%s320 + $0x60] sm:$0xff]
      %v356 = vld [vmem:[%s320 + $0x68] sm:$0xff]
      %v357 = vld [vmem:[%s320 + $0x70] sm:$0xff]
      %v358 = vld [vmem:[%s320 + $0x78] sm:$0xff]
      %v359 = vadd.bf16 %v327, %v343
      %v360 = vadd.bf16 %v328, %v344
      %v361 = vadd.bf16 %v329, %v345
      %v362 = vadd.bf16 %v330, %v346
      %v363 = vadd.bf16 %v331, %v347
      %v364 = vadd.bf16 %v332, %v348
      %v365 = vadd.bf16 %v333, %v349
      %v366 = vadd.bf16 %v334, %v350
      %v367 = vadd.bf16 %v335, %v351
      %v368 = vadd.bf16 %v336, %v352
      %v369 = vadd.bf16 %v337, %v353
      %v370 = vadd.bf16 %v338, %v354
      %v371 = vadd.bf16 %v339, %v355
      %v372 = vadd.bf16 %v340, %v356
      %v373 = vadd.bf16 %v341, %v357
      %v374 = vadd.bf16 %v342, %v358
      %v375 = vld [vmem:[%s2] sm:$0xf]
      %v376 = vld [vmem:[%s2 + $0x4] sm:$0xf]
      %v377 = vld [vmem:[%s2 + $0x8] sm:$0xf]
      %v378 = vld [vmem:[%s2 + $0xc] sm:$0xf]
      %v379 = vld [vmem:[%s2 + $0x10] sm:$0xf]
      %v380 = vld [vmem:[%s2 + $0x14] sm:$0xf]
      %v381 = vld [vmem:[%s2 + $0x18] sm:$0xf]
      %v382 = vld [vmem:[%s2 + $0x1c] sm:$0xf]
      %v383 = vld [vmem:[%s2 + $0x20] sm:$0xf]
      %v384 = vld [vmem:[%s2 + $0x24] sm:$0xf]
      %v385 = vld [vmem:[%s2 + $0x28] sm:$0xf]
      %v386 = vld [vmem:[%s2 + $0x2c] sm:$0xf]
      %v387 = vld [vmem:[%s2 + $0x30] sm:$0xf]
      %v388 = vld [vmem:[%s2 + $0x34] sm:$0xf]
      %v389 = vld [vmem:[%s2 + $0x38] sm:$0xf]
      %v390 = vld [vmem:[%s2 + $0x3c] sm:$0xf]
      %v391 = vld [vmem:[%s2 + $0x40] sm:$0xf]
      %v392 = vld [vmem:[%s2 + $0x44] sm:$0xf]
      %v393 = vld [vmem:[%s2 + $0x48] sm:$0xf]
      %v394 = vld [vmem:[%s2 + $0x4c] sm:$0xf]
      %v395 = vld [vmem:[%s2 + $0x50] sm:$0xf]
      %v396 = vld [vmem:[%s2 + $0x54] sm:$0xf]
      %v397 = vld [vmem:[%s2 + $0x58] sm:$0xf]
      %v398 = vld [vmem:[%s2 + $0x5c] sm:$0xf]
      %v399 = vld [vmem:[%s2 + $0x60] sm:$0xf]
      %v400 = vld [vmem:[%s2 + $0x64] sm:$0xf]
      %v401 = vld [vmem:[%s2 + $0x68] sm:$0xf]
      %v402 = vld [vmem:[%s2 + $0x6c] sm:$0xf]
      %v403 = vld [vmem:[%s2 + $0x70] sm:$0xf]
      %v404 = vld [vmem:[%s2 + $0x74] sm:$0xf]
      %v405 = vld [vmem:[%s2 + $0x78] sm:$0xf]
      %v406 = vld [vmem:[%s2 + $0x7c] sm:$0xf]
      %v407 = vld [vmem:[%s2 + $0x80] sm:$0xf]
      %v408 = vld [vmem:[%s2 + $0x84] sm:$0xf]
      %v409 = vld [vmem:[%s2 + $0x88] sm:$0xf]
      %v410 = vld [vmem:[%s2 + $0x8c] sm:$0xf]
      %v411 = vld [vmem:[%s2 + $0x90] sm:$0xf]
      %v412 = vld [vmem:[%s2 + $0x94] sm:$0xf]
      %v413 = vld [vmem:[%s2 + $0x98] sm:$0xf]
      %v414 = vld [vmem:[%s2 + $0x9c] sm:$0xf]
      %v415 = vld [vmem:[%s2 + $0xa0] sm:$0xf]
      %v416 = vld [vmem:[%s2 + $0xa4] sm:$0xf]
      %v417 = vld [vmem:[%s2 + $0xa8] sm:$0xf]
      %v418 = vld [vmem:[%s2 + $0xac] sm:$0xf]
      %v419 = vld [vmem:[%s2 + $0xb0] sm:$0xf]
      %v420 = vld [vmem:[%s2 + $0xb4] sm:$0xf]
      %v421 = vld [vmem:[%s2 + $0xb8] sm:$0xf]
      %v422 = vld [vmem:[%s2 + $0xbc] sm:$0xf]
      %v423 = vld [vmem:[%s2 + $0xc0] sm:$0xf]
      %v424 = vld [vmem:[%s2 + $0xc4] sm:$0xf]
      %v425 = vld [vmem:[%s2 + $0xc8] sm:$0xf]
      %v426 = vld [vmem:[%s2 + $0xcc] sm:$0xf]
      %v427 = vld [vmem:[%s2 + $0xd0] sm:$0xf]
      %v428 = vld [vmem:[%s2 + $0xd4] sm:$0xf]
      %v429 = vld [vmem:[%s2 + $0xd8] sm:$0xf]
      %v430 = vld [vmem:[%s2 + $0xdc] sm:$0xf]
      %v431 = vld [vmem:[%s2 + $0xe0] sm:$0xf]
      %v432 = vld [vmem:[%s2 + $0xe4] sm:$0xf]
      %v433 = vld [vmem:[%s2 + $0xe8] sm:$0xf]
      %v434 = vld [vmem:[%s2 + $0xec] sm:$0xf]
      %v435 = vld [vmem:[%s2 + $0xf0] sm:$0xf]
      %v436 = vld [vmem:[%s2 + $0xf4] sm:$0xf]
      %v437 = vld [vmem:[%s2 + $0xf8] sm:$0xf]
      %v438 = vld [vmem:[%s2 + $0xfc] sm:$0xf]
      %v439 = vld [vmem:[%s3] sm:$0x1]
      %v441 = vlaneseq
      %v442 = vshrl.u32 %v441, 7
      %v443 = vsub.s32 0, %v442
      %v444 = vrot.slane %v439, %v443
      %v462 = vunpack.c.l.b16 %v359
      %v463 = vunpack.c.h.b16 %v359
      %v464 = vunpack.c.l.b16 %v360
      %v465 = vunpack.c.h.b16 %v360
      %v466 = vunpack.c.l.b16 %v361
      %v467 = vunpack.c.h.b16 %v361
      %v468 = vunpack.c.l.b16 %v362
      %v469 = vunpack.c.h.b16 %v362
      %v470 = vunpack.c.l.b16 %v363
      %v471 = vunpack.c.h.b16 %v363
      %v472 = vunpack.c.l.b16 %v364
      %v473 = vunpack.c.h.b16 %v364
      %v474 = vunpack.c.l.b16 %v365
      %v475 = vunpack.c.h.b16 %v365
      %v476 = vunpack.c.l.b16 %v366
      %v477 = vunpack.c.h.b16 %v366
      %v478 = vunpack.c.l.b16 %v367
      %v479 = vunpack.c.h.b16 %v367
      %v480 = vunpack.c.l.b16 %v368
      %v481 = vunpack.c.h.b16 %v368
      %v482 = vunpack.c.l.b16 %v369
      %v483 = vunpack.c.h.b16 %v369
      %v484 = vunpack.c.l.b16 %v370
      %v485 = vunpack.c.h.b16 %v370
      %v486 = vunpack.c.l.b16 %v371
      %v487 = vunpack.c.h.b16 %v371
      %v488 = vunpack.c.l.b16 %v372
      %v489 = vunpack.c.h.b16 %v372
      %v490 = vunpack.c.l.b16 %v373
      %v491 = vunpack.c.h.b16 %v373
      %v492 = vunpack.c.l.b16 %v374
      %v493 = vunpack.c.h.b16 %v374
      %v494 = vpack.c.b16 %v466, %v462
      %v495 = vpack.c.b16 %v467, %v463
      %v496 = vpack.c.b16 %v468, %v464
      %v497 = vpack.c.b16 %v469, %v465
      %v498 = vpack.c.b16 %v474, %v470
      %v499 = vpack.c.b16 %v475, %v471
      %v500 = vpack.c.b16 %v476, %v472
      %v501 = vpack.c.b16 %v477, %v473
      %v502 = vpack.c.b16 %v482, %v478
      %v503 = vpack.c.b16 %v483, %v479
      %v504 = vpack.c.b16 %v484, %v480
      %v505 = vpack.c.b16 %v485, %v481
      %v506 = vpack.c.b16 %v490, %v486
      %v507 = vpack.c.b16 %v491, %v487
      %v508 = vpack.c.b16 %v492, %v488
      %v509 = vpack.c.b16 %v493, %v489
      %v590 = vunpack.c.l.b16 %v375
      %v591 = vunpack.c.l.b16 %v376
      %v592 = vunpack.c.l.b16 %v377
      %v593 = vunpack.c.l.b16 %v378
      %v594 = vunpack.c.l.b16 %v379
      %v595 = vunpack.c.l.b16 %v380
      %v596 = vunpack.c.l.b16 %v381
      %v597 = vunpack.c.l.b16 %v382
      %v598 = vunpack.c.l.b16 %v383
      %v599 = vunpack.c.l.b16 %v384
      %v600 = vunpack.c.l.b16 %v385
      %v601 = vunpack.c.l.b16 %v386
      %v602 = vunpack.c.l.b16 %v387
      %v603 = vunpack.c.l.b16 %v388
      %v604 = vunpack.c.l.b16 %v389
      %v605 = vunpack.c.l.b16 %v390
      %v606 = vunpack.c.l.b16 %v391
      %v607 = vunpack.c.l.b16 %v392
      %v608 = vunpack.c.l.b16 %v393
      %v609 = vunpack.c.l.b16 %v394
      %v610 = vunpack.c.l.b16 %v395
      %v611 = vunpack.c.l.b16 %v396
      %v612 = vunpack.c.l.b16 %v397
      %v613 = vunpack.c.l.b16 %v398
      %v614 = vunpack.c.l.b16 %v399
      %v615 = vunpack.c.l.b16 %v400
      %v616 = vunpack.c.l.b16 %v401
      %v617 = vunpack.c.l.b16 %v402
      %v618 = vunpack.c.l.b16 %v403
      %v619 = vunpack.c.l.b16 %v404
      %v620 = vunpack.c.l.b16 %v405
      %v621 = vunpack.c.l.b16 %v406
      %v622 = vunpack.c.l.b16 %v407
      %v623 = vunpack.c.l.b16 %v408
      %v624 = vunpack.c.l.b16 %v409
      %v625 = vunpack.c.l.b16 %v410
      %v626 = vunpack.c.l.b16 %v411
      %v627 = vunpack.c.l.b16 %v412
      %v628 = vunpack.c.l.b16 %v413
      %v629 = vunpack.c.l.b16 %v414
      %v630 = vunpack.c.l.b16 %v415
      %v631 = vunpack.c.l.b16 %v416
      %v632 = vunpack.c.l.b16 %v417
      %v633 = vunpack.c.l.b16 %v418
      %v634 = vunpack.c.l.b16 %v419
      %v635 = vunpack.c.l.b16 %v420
      %v636 = vunpack.c.l.b16 %v421
      %v637 = vunpack.c.l.b16 %v422
      %v638 = vunpack.c.l.b16 %v423
      %v639 = vunpack.c.l.b16 %v424
      %v640 = vunpack.c.l.b16 %v425
      %v641 = vunpack.c.l.b16 %v426
      %v642 = vunpack.c.l.b16 %v427
      %v643 = vunpack.c.l.b16 %v428
      %v644 = vunpack.c.l.b16 %v429
      %v645 = vunpack.c.l.b16 %v430
      %v646 = vunpack.c.l.b16 %v431
      %v647 = vunpack.c.l.b16 %v432
      %v648 = vunpack.c.l.b16 %v433
      %v649 = vunpack.c.l.b16 %v434
      %v650 = vunpack.c.l.b16 %v435
      %v651 = vunpack.c.l.b16 %v436
      %v652 = vunpack.c.l.b16 %v437
      %v653 = vunpack.c.l.b16 %v438
      %v654 = vpack.c.b16 %v591, %v590
      %v655 = vpack.c.b16 %v593, %v592
      %v656 = vpack.c.b16 %v595, %v594
      %v657 = vpack.c.b16 %v597, %v596
      %v658 = vpack.c.b16 %v599, %v598
      %v659 = vpack.c.b16 %v601, %v600
      %v660 = vpack.c.b16 %v603, %v602
      %v661 = vpack.c.b16 %v605, %v604
      %v662 = vpack.c.b16 %v607, %v606
      %v663 = vpack.c.b16 %v609, %v608
      %v664 = vpack.c.b16 %v611, %v610
      %v665 = vpack.c.b16 %v613, %v612
      %v666 = vpack.c.b16 %v615, %v614
      %v667 = vpack.c.b16 %v617, %v616
      %v668 = vpack.c.b16 %v619, %v618
      %v669 = vpack.c.b16 %v621, %v620
      %v670 = vpack.c.b16 %v623, %v622
      %v671 = vpack.c.b16 %v625, %v624
      %v672 = vpack.c.b16 %v627, %v626
      %v673 = vpack.c.b16 %v629, %v628
      %v674 = vpack.c.b16 %v631, %v630
      %v675 = vpack.c.b16 %v633, %v632
      %v676 = vpack.c.b16 %v635, %v634
      %v677 = vpack.c.b16 %v637, %v636
      %v678 = vpack.c.b16 %v639, %v638
      %v679 = vpack.c.b16 %v641, %v640
      %v680 = vpack.c.b16 %v643, %v642
      %v681 = vpack.c.b16 %v645, %v644
      %v682 = vpack.c.b16 %v647, %v646
      %v683 = vpack.c.b16 %v649, %v648
      %v684 = vpack.c.b16 %v651, %v650
      %v685 = vpack.c.b16 %v653, %v652
      %718 = vmatprep.subr.bf16.mxu0 0
      %719 = vmatpush1.bf16.msra.mxu0 %v654
      %720 = vmatprep.subr.bf16.mxu0 0
      %721 = vmatpush1.bf16.msra.mxu0 %v655
      %722 = vmatprep.subr.bf16.mxu0 0
      %723 = vmatpush1.bf16.msra.mxu0 %v656
      %724 = vmatprep.subr.bf16.mxu0 0
      %725 = vmatpush1.bf16.msra.mxu0 %v657
      %726 = vmatprep.subr.bf16.mxu0 0
      %727 = vmatpush1.bf16.msra.mxu0 %v658
      %728 = vmatprep.subr.bf16.mxu0 0
      %729 = vmatpush1.bf16.msra.mxu0 %v659
      %730 = vmatprep.subr.bf16.mxu0 0
      %731 = vmatpush1.bf16.msra.mxu0 %v660
      %732 = vmatprep.subr.bf16.mxu0 0
      %733 = vmatpush1.bf16.msra.mxu0 %v661
      %734 = vmatprep.subr.bf16.mxu0 0
      %735 = vmatpush1.bf16.msra.mxu0 %v662
      %736 = vmatprep.subr.bf16.mxu0 0
      %737 = vmatpush1.bf16.msra.mxu0 %v663
      %738 = vmatprep.subr.bf16.mxu0 0
      %739 = vmatpush1.bf16.msra.mxu0 %v664
      %740 = vmatprep.subr.bf16.mxu0 0
      %741 = vmatpush1.bf16.msra.mxu0 %v665
      %742 = vmatprep.subr.bf16.mxu0 0
      %743 = vmatpush1.bf16.msra.mxu0 %v666
      %744 = vmatprep.subr.bf16.mxu0 0
      %745 = vmatpush1.bf16.msra.mxu0 %v667
      %746 = vmatprep.subr.bf16.mxu0 0
      %747 = vmatpush1.bf16.msra.mxu0 %v668
      %748 = vmatprep.subr.bf16.mxu0 0
      %749 = vmatpush1.bf16.msra.mxu0 %v669
      %750 = vmatprep.mubr.bf16.mxu0 %v495
      %751 = vmatmul.mubr.bf16.gmra.mrb[0].mxu0 %v494
      %v752 = vpop.f32.mrb[0].mxu0
      %v753 = vadd.f32 %v444, %v752
      %v754 = vpop.f32.mrb[0].mxu0
      %v755 = vpop.f32.mrb[0].mxu0
      %v756 = vadd.f32 %v444, %v755
      %v757 = vpop.f32.mrb[0].mxu0
      %758 = vmatprep.mubr.bf16.mxu0 %v499
      %759 = vmatmul.mubr.bf16.gmra.mrb[0].mxu0 %v498
      %v760 = vpop.f32.mrb[0].mxu0
      %v761 = vadd.f32 %v444, %v760
      %v762 = vpop.f32.mrb[0].mxu0
      %v763 = vpop.f32.mrb[0].mxu0
      %v764 = vadd.f32 %v444, %v763
      %v765 = vpop.f32.mrb[0].mxu0
      %766 = vmatprep.mubr.bf16.mxu0 %v503
      %767 = vmatmul.mubr.bf16.gmra.mrb[0].mxu0 %v502
      %v768 = vpop.f32.mrb[0].mxu0
      %v769 = vadd.f32 %v444, %v768
      %v770 = vpop.f32.mrb[0].mxu0
      %v771 = vpop.f32.mrb[0].mxu0
      %v772 = vadd.f32 %v444, %v771
      %v773 = vpop.f32.mrb[0].mxu0
      %774 = vmatprep.mubr.bf16.mxu0 %v507
      %775 = vmatmul.mubr.bf16.gmra.mrb[0].mxu0 %v506
      %v776 = vpop.f32.mrb[0].mxu0
      %v777 = vadd.f32 %v444, %v776
      %v778 = vpop.f32.mrb[0].mxu0
      %v779 = vpop.f32.mrb[0].mxu0
      %v780 = vadd.f32 %v444, %v779
      %v781 = vpop.f32.mrb[0].mxu0
      %782 = vdwg.mxu0
      %783 = vmatprep.subr.bf16.mxu0 0
      %784 = vmatpush1.bf16.msra.mxu0 %v670
      %785 = vmatprep.subr.bf16.mxu0 0
      %786 = vmatpush1.bf16.msra.mxu0 %v671
      %787 = vmatprep.subr.bf16.mxu0 0
      %788 = vmatpush1.bf16.msra.mxu0 %v672
      %789 = vmatprep.subr.bf16.mxu0 0
      %790 = vmatpush1.bf16.msra.mxu0 %v673
      %791 = vmatprep.subr.bf16.mxu0 0
      %792 = vmatpush1.bf16.msra.mxu0 %v674
      %793 = vmatprep.subr.bf16.mxu0 0
      %794 = vmatpush1.bf16.msra.mxu0 %v675
      %795 = vmatprep.subr.bf16.mxu0 0
      %796 = vmatpush1.bf16.msra.mxu0 %v676
      %797 = vmatprep.subr.bf16.mxu0 0
      %798 = vmatpush1.bf16.msra.mxu0 %v677
      %799 = vmatprep.subr.bf16.mxu0 0
      %800 = vmatpush1.bf16.msra.mxu0 %v678
      %801 = vmatprep.subr.bf16.mxu0 0
      %802 = vmatpush1.bf16.msra.mxu0 %v679
      %803 = vmatprep.subr.bf16.mxu0 0
      %804 = vmatpush1.bf16.msra.mxu0 %v680
      %805 = vmatprep.subr.bf16.mxu0 0
      %806 = vmatpush1.bf16.msra.mxu0 %v681
      %807 = vmatprep.subr.bf16.mxu0 0
      %808 = vmatpush1.bf16.msra.mxu0 %v682
      %809 = vmatprep.subr.bf16.mxu0 0
      %810 = vmatpush1.bf16.msra.mxu0 %v683
      %811 = vmatprep.subr.bf16.mxu0 0
      %812 = vmatpush1.bf16.msra.mxu0 %v684
      %813 = vmatprep.subr.bf16.mxu0 0
      %814 = vmatpush1.bf16.msra.mxu0 %v685
      %815 = vmatprep.mubr.bf16.mxu0 %v497
      %816 = vmatmul.mubr.bf16.gmra.mrb[0].mxu0 %v496
      %v817 = vpop.f32.mrb[0].mxu0
      %v818 = vadd.f32 %v753, %v817
      %v819 = vpop.f32.mrb[0].mxu0
      %v820 = vpop.f32.mrb[0].mxu0
      %v821 = vadd.f32 %v756, %v820
      %v822 = vpop.f32.mrb[0].mxu0
      %823 = vmatprep.mubr.bf16.mxu0 %v501
      %824 = vmatmul.mubr.bf16.gmra.mrb[0].mxu0 %v500
      %v825 = vpop.f32.mrb[0].mxu0
      %v826 = vadd.f32 %v761, %v825
      %v827 = vpop.f32.mrb[0].mxu0
      %v828 = vpop.f32.mrb[0].mxu0
      %v829 = vadd.f32 %v764, %v828
      %v830 = vpop.f32.mrb[0].mxu0
      %831 = vmatprep.mubr.bf16.mxu0 %v505
      %832 = vmatmul.mubr.bf16.gmra.mrb[0].mxu0 %v504
      %v833 = vpop.f32.mrb[0].mxu0
      %v834 = vadd.f32 %v769, %v833
      %v835 = vpop.f32.mrb[0].mxu0
      %v836 = vpop.f32.mrb[0].mxu0
      %v837 = vadd.f32 %v772, %v836
      %v838 = vpop.f32.mrb[0].mxu0
      %839 = vmatprep.mubr.bf16.mxu0 %v509
      %840 = vmatmul.mubr.bf16.gmra.mrb[0].mxu0 %v508
      %v841 = vpop.f32.mrb[0].mxu0
      %v842 = vadd.f32 %v777, %v841
      %v843 = vpop.f32.mrb[0].mxu0
      %v844 = vpop.f32.mrb[0].mxu0
      %v845 = vadd.f32 %v780, %v844
      %v846 = vpop.f32.mrb[0].mxu0
      %847 = vdwg.mxu0
      %vm848 = vcmp.ge.f32.partialorder %v818, 0.0
      %vm849 = vcmp.ge.f32.partialorder %v821, 0.0
      %vm850 = vcmp.ge.f32.partialorder %v826, 0.0
      %vm851 = vcmp.ge.f32.partialorder %v829, 0.0
      %vm852 = vcmp.ge.f32.partialorder %v834, 0.0
      %vm853 = vcmp.ge.f32.partialorder %v837, 0.0
      %vm854 = vcmp.ge.f32.partialorder %v842, 0.0
      %vm855 = vcmp.ge.f32.partialorder %v845, 0.0
      %v856 = vmul.f32 %v818, 0.2
      %v857 = vmul.f32 %v821, 0.2
      %v858 = vmul.f32 %v826, 0.2
      %v859 = vmul.f32 %v829, 0.2
      %v860 = vmul.f32 %v834, 0.2
      %v861 = vmul.f32 %v837, 0.2
      %v862 = vmul.f32 %v842, 0.2
      %v863 = vmul.f32 %v845, 0.2
      %v864 = vsel %vm848, %v818, %v856
      %v865 = vsel %vm849, %v821, %v857
      %v866 = vsel %vm850, %v826, %v858
      %v867 = vsel %vm851, %v829, %v859
      %v868 = vsel %vm852, %v834, %v860
      %v869 = vsel %vm853, %v837, %v861
      %v870 = vsel %vm854, %v842, %v862
      %v871 = vsel %vm855, %v845, %v863
      %v872 = vpack.c.bf16 %v865, %v864
      %v873 = vpack.c.bf16 %v867, %v866
      %v874 = vpack.c.bf16 %v869, %v868
      %v875 = vpack.c.bf16 %v871, %v870
      %v880 = vunpack.c.l.b16 %v872
      %v881 = vunpack.c.h.b16 %v872
      %v882 = vunpack.c.l.b16 %v873
      %v883 = vunpack.c.h.b16 %v873
      %v884 = vunpack.c.l.b16 %v874
      %v885 = vunpack.c.h.b16 %v874
      %v886 = vunpack.c.l.b16 %v875
      %v887 = vunpack.c.h.b16 %v875
      %v888 = vpack.c.b16 %v880, %v880
      %v889 = vpack.c.b16 %v881, %v881
      %v890 = vpack.c.b16 %v882, %v882
      %v891 = vpack.c.b16 %v883, %v883
      %v892 = vpack.c.b16 %v884, %v884
      %v893 = vpack.c.b16 %v885, %v885
      %v894 = vpack.c.b16 %v886, %v886
      %v895 = vpack.c.b16 %v887, %v887
      %904 = vst [vmem:[#allocation2] sm:$0xff] 0
      %905 = vst [vmem:[#allocation2 + $0x8] sm:$0xf] 0
      %s906 = scalar_lea.vmem [#allocation2], 108
      %907 = vst [vmem:[%s906] sm:$0xff] 0
      %908 = vst [vmem:[%s906 + $0x8] sm:$0xf] 0
      %s909 = scalar_lea.vmem [#allocation2], 12
      %vm910 = vcmask 1040384
      %vm911 = vsmask.f32 256
      %vm912 = vmand %vm910, %vm911
      %v913 = vld [vmem:[%s909] sm:$0x1]
      %v914 = vsel %vm912, 0, %v913
      %915 = vst [vmem:[%s909] sm:$0x1] %v914
      %v916 = vld [vmem:[%s909 + $0xc] sm:$0x1]
      %v917 = vsel %vm912, 0, %v916
      %918 = vst [vmem:[%s909 + $0xc] sm:$0x1] %v917
      %v919 = vld [vmem:[%s909 + $0x18] sm:$0x1]
      %v920 = vsel %vm912, 0, %v919
      %921 = vst [vmem:[%s909 + $0x18] sm:$0x1] %v920
      %v922 = vld [vmem:[%s909 + $0x24] sm:$0x1]
      %v923 = vsel %vm912, 0, %v922
      %924 = vst [vmem:[%s909 + $0x24] sm:$0x1] %v923
      %v925 = vld [vmem:[%s909 + $0x30] sm:$0x1]
      %v926 = vsel %vm912, 0, %v925
      %927 = vst [vmem:[%s909 + $0x30] sm:$0x1] %v926
      %v928 = vld [vmem:[%s909 + $0x3c] sm:$0x1]
      %v929 = vsel %vm912, 0, %v928
      %930 = vst [vmem:[%s909 + $0x3c] sm:$0x1] %v929
      %v931 = vld [vmem:[%s909 + $0x48] sm:$0x1]
      %v932 = vsel %vm912, 0, %v931
      %933 = vst [vmem:[%s909 + $0x48] sm:$0x1] %v932
      %v934 = vld [vmem:[%s909 + $0x54] sm:$0x1]
      %v935 = vsel %vm912, 0, %v934
      %936 = vst [vmem:[%s909 + $0x54] sm:$0x1] %v935
      %v938 = vshrl.u32 %v888, 16
      %v940 = vrot.slane %v938, 7
      %v941 = vshll.u32 %v888, 16
      %v943 = vor.u32 %v940, %v941
      %v945 = vshrl.u32 %v889, 16
      %v947 = vrot.slane %v945, 7
      %v948 = vshll.u32 %v889, 16
      %v950 = vor.u32 %v947, %v948
      %v952 = vshrl.u32 %v890, 16
      %v954 = vrot.slane %v952, 7
      %v955 = vshll.u32 %v890, 16
      %v957 = vor.u32 %v954, %v955
      %v959 = vshrl.u32 %v891, 16
      %v961 = vrot.slane %v959, 7
      %v962 = vshll.u32 %v891, 16
      %v964 = vor.u32 %v961, %v962
      %v966 = vshrl.u32 %v892, 16
      %v968 = vrot.slane %v966, 7
      %v969 = vshll.u32 %v892, 16
      %v971 = vor.u32 %v968, %v969
      %v973 = vshrl.u32 %v893, 16
      %v975 = vrot.slane %v973, 7
      %v976 = vshll.u32 %v893, 16
      %v978 = vor.u32 %v975, %v976
      %v980 = vshrl.u32 %v894, 16
      %v982 = vrot.slane %v980, 7
      %v983 = vshll.u32 %v894, 16
      %v985 = vor.u32 %v982, %v983
      %v987 = vshrl.u32 %v895, 16
      %v989 = vrot.slane %v987, 7
      %v990 = vshll.u32 %v895, 16
      %v992 = vor.u32 %v989, %v990
      %vm1001 = vcmask 1043456
      %vm1002 = vsmask.f32 7938
      %vm1003 = vmand %vm1001, %vm1002
      %v1004 = vld [vmem:[%s909] sm:$0xf]
      %v1005 = vsel %vm1003, %v943, %v1004
      %1006 = vst [vmem:[%s909] sm:$0xf] %v1005
      %v1007 = vld [vmem:[%s909 + $0xc] sm:$0xf]
      %v1008 = vsel %vm1003, %v950, %v1007
      %1009 = vst [vmem:[%s909 + $0xc] sm:$0xf] %v1008
      %v1010 = vld [vmem:[%s909 + $0x18] sm:$0xf]
      %v1011 = vsel %vm1003, %v957, %v1010
      %1012 = vst [vmem:[%s909 + $0x18] sm:$0xf] %v1011
      %v1013 = vld [vmem:[%s909 + $0x24] sm:$0xf]
      %v1014 = vsel %vm1003, %v964, %v1013
      %1015 = vst [vmem:[%s909 + $0x24] sm:$0xf] %v1014
      %v1016 = vld [vmem:[%s909 + $0x30] sm:$0xf]
      %v1017 = vsel %vm1003, %v971, %v1016
      %1018 = vst [vmem:[%s909 + $0x30] sm:$0xf] %v1017
      %v1019 = vld [vmem:[%s909 + $0x3c] sm:$0xf]
      %v1020 = vsel %vm1003, %v978, %v1019
      %1021 = vst [vmem:[%s909 + $0x3c] sm:$0xf] %v1020
      %v1022 = vld [vmem:[%s909 + $0x48] sm:$0xf]
      %v1023 = vsel %vm1003, %v985, %v1022
      %1024 = vst [vmem:[%s909 + $0x48] sm:$0xf] %v1023
      %v1025 = vld [vmem:[%s909 + $0x54] sm:$0xf]
      %v1026 = vsel %vm1003, %v992, %v1025
      %1027 = vst [vmem:[%s909 + $0x54] sm:$0xf] %v1026
      %1028 = vst [vmem:[%s909 + $0x4] sm:$0xf] %v888
      %1029 = vst [vmem:[%s909 + $0x10] sm:$0xf] %v889
      %1030 = vst [vmem:[%s909 + $0x1c] sm:$0xf] %v890
      %1031 = vst [vmem:[%s909 + $0x28] sm:$0xf] %v891
      %1032 = vst [vmem:[%s909 + $0x34] sm:$0xf] %v892
      %1033 = vst [vmem:[%s909 + $0x40] sm:$0xf] %v893
      %1034 = vst [vmem:[%s909 + $0x4c] sm:$0xf] %v894
      %1035 = vst [vmem:[%s909 + $0x58] sm:$0xf] %v895
      %v1036 = vrot.slane %v938, 4
      %v1037 = vrot.slane %v941, 5
      %v1038 = vor.u32 %v1036, %v1037
      %v1039 = vrot.slane %v1038, 4
      %v1040 = vrot.slane %v945, 4
      %v1041 = vrot.slane %v948, 5
      %v1042 = vor.u32 %v1040, %v1041
      %v1043 = vrot.slane %v1042, 4
      %v1044 = vrot.slane %v952, 4
      %v1045 = vrot.slane %v955, 5
      %v1046 = vor.u32 %v1044, %v1045
      %v1047 = vrot.slane %v1046, 4
      %v1048 = vrot.slane %v959, 4
      %v1049 = vrot.slane %v962, 5
      %v1050 = vor.u32 %v1048, %v1049
      %v1051 = vrot.slane %v1050, 4
      %v1052 = vrot.slane %v966, 4
      %v1053 = vrot.slane %v969, 5
      %v1054 = vor.u32 %v1052, %v1053
      %v1055 = vrot.slane %v1054, 4
      %v1056 = vrot.slane %v973, 4
      %v1057 = vrot.slane %v976, 5
      %v1058 = vor.u32 %v1056, %v1057
      %v1059 = vrot.slane %v1058, 4
      %v1060 = vrot.slane %v980, 4
      %v1061 = vrot.slane %v983, 5
      %v1062 = vor.u32 %v1060, %v1061
      %v1063 = vrot.slane %v1062, 4
      %v1064 = vrot.slane %v987, 4
      %v1065 = vrot.slane %v990, 5
      %v1066 = vor.u32 %v1064, %v1065
      %v1067 = vrot.slane %v1066, 4
      %vm1076 = vsmask.f32 3328
      %vm1077 = vmand %vm1001, %vm1076
      %v1078 = vld [vmem:[%s909 + $0x8] sm:$0xf]
      %v1079 = vsel %vm1077, %v1039, %v1078
      %1080 = vst [vmem:[%s909 + $0x8] sm:$0xf] %v1079
      %v1081 = vld [vmem:[%s909 + $0x14] sm:$0xf]
      %v1082 = vsel %vm1077, %v1043, %v1081
      %1083 = vst [vmem:[%s909 + $0x14] sm:$0xf] %v1082
      %v1084 = vld [vmem:[%s909 + $0x20] sm:$0xf]
      %v1085 = vsel %vm1077, %v1047, %v1084
      %1086 = vst [vmem:[%s909 + $0x20] sm:$0xf] %v1085
      %v1087 = vld [vmem:[%s909 + $0x2c] sm:$0xf]
      %v1088 = vsel %vm1077, %v1051, %v1087
      %1089 = vst [vmem:[%s909 + $0x2c] sm:$0xf] %v1088
      %v1090 = vld [vmem:[%s909 + $0x38] sm:$0xf]
      %v1091 = vsel %vm1077, %v1055, %v1090
      %1092 = vst [vmem:[%s909 + $0x38] sm:$0xf] %v1091
      %v1093 = vld [vmem:[%s909 + $0x44] sm:$0xf]
      %v1094 = vsel %vm1077, %v1059, %v1093
      %1095 = vst [vmem:[%s909 + $0x44] sm:$0xf] %v1094
      %v1096 = vld [vmem:[%s909 + $0x50] sm:$0xf]
      %v1097 = vsel %vm1077, %v1063, %v1096
      %1098 = vst [vmem:[%s909 + $0x50] sm:$0xf] %v1097
      %v1099 = vld [vmem:[%s909 + $0x5c] sm:$0xf]
      %v1100 = vsel %vm1077, %v1067, %v1099
      %1101 = vst [vmem:[%s909 + $0x5c] sm:$0xf] %v1100
      %vm1102 = vcmask 1043459
      %vm1103 = vsmask.f32 7950
      %vm1104 = vmand %vm1102, %vm1103
      %v1105 = vld [vmem:[%s909 + $0x8] sm:$0x8]
      %v1106 = vsel %vm1104, 0, %v1105
      %1107 = vst [vmem:[%s909 + $0x8] sm:$0x8] %v1106
      %v1108 = vld [vmem:[%s909 + $0x14] sm:$0x8]
      %v1109 = vsel %vm1104, 0, %v1108
      %1110 = vst [vmem:[%s909 + $0x14] sm:$0x8] %v1109
      %v1111 = vld [vmem:[%s909 + $0x20] sm:$0x8]
      %v1112 = vsel %vm1104, 0, %v1111
      %1113 = vst [vmem:[%s909 + $0x20] sm:$0x8] %v1112
      %v1114 = vld [vmem:[%s909 + $0x2c] sm:$0x8]
      %v1115 = vsel %vm1104, 0, %v1114
      %1116 = vst [vmem:[%s909 + $0x2c] sm:$0x8] %v1115
      %v1117 = vld [vmem:[%s909 + $0x38] sm:$0x8]
      %v1118 = vsel %vm1104, 0, %v1117
      %1119 = vst [vmem:[%s909 + $0x38] sm:$0x8] %v1118
      %v1120 = vld [vmem:[%s909 + $0x44] sm:$0x8]
      %v1121 = vsel %vm1104, 0, %v1120
      %1122 = vst [vmem:[%s909 + $0x44] sm:$0x8] %v1121
      %v1123 = vld [vmem:[%s909 + $0x50] sm:$0x8]
      %v1124 = vsel %vm1104, 0, %v1123
      %1125 = vst [vmem:[%s909 + $0x50] sm:$0x8] %v1124
      %v1126 = vld [vmem:[%s909 + $0x5c] sm:$0x8]
      %v1127 = vsel %vm1104, 0, %v1126
      %1128 = vst [vmem:[%s909 + $0x5c] sm:$0x8] %v1127
      %v1129 = vld [vmem:[#allocation2] sm:$0xff]
      %v1130 = vld [vmem:[#allocation2 + $0x8] sm:$0xf]
      %v1131 = vld [vmem:[#allocation2 + $0xc] sm:$0xff]
      %v1132 = vld [vmem:[#allocation2 + $0x14] sm:$0xf]
      %v1133 = vld [vmem:[#allocation2 + $0x18] sm:$0xff]
      %v1134 = vld [vmem:[#allocation2 + $0x20] sm:$0xf]
      %v1135 = vld [vmem:[#allocation2 + $0x24] sm:$0xff]
      %v1136 = vld [vmem:[#allocation2 + $0x2c] sm:$0xf]
      %v1137 = vld [vmem:[#allocation2 + $0x30] sm:$0xff]
      %v1138 = vld [vmem:[#allocation2 + $0x38] sm:$0xf]
      %v1139 = vld [vmem:[#allocation2 + $0x3c] sm:$0xff]
      %v1140 = vld [vmem:[#allocation2 + $0x44] sm:$0xf]
      %v1141 = vld [vmem:[#allocation2 + $0x48] sm:$0xff]
      %v1142 = vld [vmem:[#allocation2 + $0x50] sm:$0xf]
      %v1143 = vld [vmem:[#allocation2 + $0x54] sm:$0xff]
      %v1144 = vld [vmem:[#allocation2 + $0x5c] sm:$0xf]
      %v1145 = vld [vmem:[%s4] sm:$0xf]
      %v1146 = vld [vmem:[%s4 + $0x4] sm:$0xf]
      %v1147 = vld [vmem:[%s4 + $0x8] sm:$0xf]
      %v1148 = vld [vmem:[%s4 + $0xc] sm:$0xf]
      %v1149 = vld [vmem:[%s4 + $0x10] sm:$0xf]
      %v1150 = vld [vmem:[%s4 + $0x14] sm:$0xf]
      %v1151 = vld [vmem:[%s4 + $0x18] sm:$0xf]
      %v1152 = vld [vmem:[%s4 + $0x1c] sm:$0xf]
      %v1153 = vld [vmem:[%s4 + $0x20] sm:$0xf]
      %v1154 = vld [vmem:[%s4 + $0x24] sm:$0xf]
      %v1155 = vld [vmem:[%s4 + $0x28] sm:$0xf]
      %v1156 = vld [vmem:[%s4 + $0x2c] sm:$0xf]
      %v1157 = vld [vmem:[%s4 + $0x30] sm:$0xf]
      %v1158 = vld [vmem:[%s4 + $0x34] sm:$0xf]
      %v1159 = vld [vmem:[%s4 + $0x38] sm:$0xf]
      %v1160 = vld [vmem:[%s4 + $0x3c] sm:$0xf]
      %v1161 = vld [vmem:[%s4 + $0x40] sm:$0xf]
      %v1162 = vld [vmem:[%s4 + $0x44] sm:$0xf]
      %v1163 = vld [vmem:[%s4 + $0x48] sm:$0xf]
      %v1164 = vld [vmem:[%s4 + $0x4c] sm:$0xf]
      %v1165 = vld [vmem:[%s4 + $0x50] sm:$0xf]
      %v1166 = vld [vmem:[%s4 + $0x54] sm:$0xf]
      %v1167 = vld [vmem:[%s4 + $0x58] sm:$0xf]
      %v1168 = vld [vmem:[%s4 + $0x5c] sm:$0xf]
      %v1169 = vld [vmem:[%s4 + $0x60] sm:$0xf]
      %v1170 = vld [vmem:[%s4 + $0x64] sm:$0xf]
      %v1171 = vld [vmem:[%s4 + $0x68] sm:$0xf]
      %v1172 = vld [vmem:[%s4 + $0x6c] sm:$0xf]
      %v1173 = vld [vmem:[%s4 + $0x70] sm:$0xf]
      %v1174 = vld [vmem:[%s4 + $0x74] sm:$0xf]
      %v1175 = vld [vmem:[%s4 + $0x78] sm:$0xf]
      %v1176 = vld [vmem:[%s4 + $0x7c] sm:$0xf]
      %v1177 = vld [vmem:[%s4 + $0x80] sm:$0xf]
      %v1178 = vld [vmem:[%s4 + $0x84] sm:$0xf]
      %v1179 = vld [vmem:[%s4 + $0x88] sm:$0xf]
      %v1180 = vld [vmem:[%s4 + $0x8c] sm:$0xf]
      %v1181 = vld [vmem:[%s4 + $0x90] sm:$0xf]
      %v1182 = vld [vmem:[%s4 + $0x94] sm:$0xf]
      %v1183 = vld [vmem:[%s4 + $0x98] sm:$0xf]
      %v1184 = vld [vmem:[%s4 + $0x9c] sm:$0xf]
      %v1185 = vld [vmem:[%s4 + $0xa0] sm:$0xf]
      %v1186 = vld [vmem:[%s4 + $0xa4] sm:$0xf]
      %v1187 = vld [vmem:[%s4 + $0xa8] sm:$0xf]
      %v1188 = vld [vmem:[%s4 + $0xac] sm:$0xf]
      %v1189 = vld [vmem:[%s4 + $0xb0] sm:$0xf]
      %v1190 = vld [vmem:[%s4 + $0xb4] sm:$0xf]
      %v1191 = vld [vmem:[%s4 + $0xb8] sm:$0xf]
      %v1192 = vld [vmem:[%s4 + $0xbc] sm:$0xf]
      %v1193 = vld [vmem:[%s909] sm:$0xff]
      %v1194 = vld [vmem:[%s909 + $0x8] sm:$0xf]
      %v1195 = vld [vmem:[%s909 + $0xc] sm:$0xff]
      %v1196 = vld [vmem:[%s909 + $0x14] sm:$0xf]
      %v1197 = vld [vmem:[%s909 + $0x18] sm:$0xff]
      %v1198 = vld [vmem:[%s909 + $0x20] sm:$0xf]
      %v1199 = vld [vmem:[%s909 + $0x24] sm:$0xff]
      %v1200 = vld [vmem:[%s909 + $0x2c] sm:$0xf]
      %v1201 = vld [vmem:[%s909 + $0x30] sm:$0xff]
      %v1202 = vld [vmem:[%s909 + $0x38] sm:$0xf]
      %v1203 = vld [vmem:[%s909 + $0x3c] sm:$0xff]
      %v1204 = vld [vmem:[%s909 + $0x44] sm:$0xf]
      %v1205 = vld [vmem:[%s909 + $0x48] sm:$0xff]
      %v1206 = vld [vmem:[%s909 + $0x50] sm:$0xf]
      %v1207 = vld [vmem:[%s909 + $0x54] sm:$0xff]
      %v1208 = vld [vmem:[%s909 + $0x5c] sm:$0xf]
      %s1209 = scalar_lea.vmem %s4, 192
      %v1210 = vld [vmem:[%s1209] sm:$0xf]
      %v1211 = vld [vmem:[%s1209 + $0x4] sm:$0xf]
      %v1212 = vld [vmem:[%s1209 + $0x8] sm:$0xf]
      %v1213 = vld [vmem:[%s1209 + $0xc] sm:$0xf]
      %v1214 = vld [vmem:[%s1209 + $0x10] sm:$0xf]
      %v1215 = vld [vmem:[%s1209 + $0x14] sm:$0xf]
      %v1216 = vld [vmem:[%s1209 + $0x18] sm:$0xf]
      %v1217 = vld [vmem:[%s1209 + $0x1c] sm:$0xf]
      %v1218 = vld [vmem:[%s1209 + $0x20] sm:$0xf]
      %v1219 = vld [vmem:[%s1209 + $0x24] sm:$0xf]
      %v1220 = vld [vmem:[%s1209 + $0x28] sm:$0xf]
      %v1221 = vld [vmem:[%s1209 + $0x2c] sm:$0xf]
      %v1222 = vld [vmem:[%s1209 + $0x30] sm:$0xf]
      %v1223 = vld [vmem:[%s1209 + $0x34] sm:$0xf]
      %v1224 = vld [vmem:[%s1209 + $0x38] sm:$0xf]
      %v1225 = vld [vmem:[%s1209 + $0x3c] sm:$0xf]
      %v1226 = vld [vmem:[%s1209 + $0x40] sm:$0xf]
      %v1227 = vld [vmem:[%s1209 + $0x44] sm:$0xf]
      %v1228 = vld [vmem:[%s1209 + $0x48] sm:$0xf]
      %v1229 = vld [vmem:[%s1209 + $0x4c] sm:$0xf]
      %v1230 = vld [vmem:[%s1209 + $0x50] sm:$0xf]
      %v1231 = vld [vmem:[%s1209 + $0x54] sm:$0xf]
      %v1232 = vld [vmem:[%s1209 + $0x58] sm:$0xf]
      %v1233 = vld [vmem:[%s1209 + $0x5c] sm:$0xf]
      %v1234 = vld [vmem:[%s1209 + $0x60] sm:$0xf]
      %v1235 = vld [vmem:[%s1209 + $0x64] sm:$0xf]
      %v1236 = vld [vmem:[%s1209 + $0x68] sm:$0xf]
      %v1237 = vld [vmem:[%s1209 + $0x6c] sm:$0xf]
      %v1238 = vld [vmem:[%s1209 + $0x70] sm:$0xf]
      %v1239 = vld [vmem:[%s1209 + $0x74] sm:$0xf]
      %v1240 = vld [vmem:[%s1209 + $0x78] sm:$0xf]
      %v1241 = vld [vmem:[%s1209 + $0x7c] sm:$0xf]
      %v1242 = vld [vmem:[%s1209 + $0x80] sm:$0xf]
      %v1243 = vld [vmem:[%s1209 + $0x84] sm:$0xf]
      %v1244 = vld [vmem:[%s1209 + $0x88] sm:$0xf]
      %v1245 = vld [vmem:[%s1209 + $0x8c] sm:$0xf]
      %v1246 = vld [vmem:[%s1209 + $0x90] sm:$0xf]
      %v1247 = vld [vmem:[%s1209 + $0x94] sm:$0xf]
      %v1248 = vld [vmem:[%s1209 + $0x98] sm:$0xf]
      %v1249 = vld [vmem:[%s1209 + $0x9c] sm:$0xf]
      %v1250 = vld [vmem:[%s1209 + $0xa0] sm:$0xf]
      %v1251 = vld [vmem:[%s1209 + $0xa4] sm:$0xf]
      %v1252 = vld [vmem:[%s1209 + $0xa8] sm:$0xf]
      %v1253 = vld [vmem:[%s1209 + $0xac] sm:$0xf]
      %v1254 = vld [vmem:[%s1209 + $0xb0] sm:$0xf]
      %v1255 = vld [vmem:[%s1209 + $0xb4] sm:$0xf]
      %v1256 = vld [vmem:[%s1209 + $0xb8] sm:$0xf]
      %v1257 = vld [vmem:[%s1209 + $0xbc] sm:$0xf]
      %v1274 = vunpack.c.l.b16 %v1193
      %v1275 = vunpack.c.h.b16 %v1193
      %v1276 = vunpack.c.l.b16 %v1194
      %v1277 = vunpack.c.l.b16 %v1195
      %v1278 = vunpack.c.h.b16 %v1195
      %v1279 = vunpack.c.l.b16 %v1196
      %v1280 = vunpack.c.l.b16 %v1197
      %v1281 = vunpack.c.h.b16 %v1197
      %v1282 = vunpack.c.l.b16 %v1198
      %v1283 = vunpack.c.l.b16 %v1199
      %v1284 = vunpack.c.h.b16 %v1199
      %v1285 = vunpack.c.l.b16 %v1200
      %v1286 = vunpack.c.l.b16 %v1201
      %v1287 = vunpack.c.h.b16 %v1201
      %v1288 = vunpack.c.l.b16 %v1202
      %v1289 = vunpack.c.l.b16 %v1203
      %v1290 = vunpack.c.h.b16 %v1203
      %v1291 = vunpack.c.l.b16 %v1204
      %v1292 = vunpack.c.l.b16 %v1205
      %v1293 = vunpack.c.h.b16 %v1205
      %v1294 = vunpack.c.l.b16 %v1206
      %v1295 = vunpack.c.l.b16 %v1207
      %v1296 = vunpack.c.h.b16 %v1207
      %v1297 = vunpack.c.l.b16 %v1208
      %v1298 = vpack.c.b16 %v1277, %v1274
      %v1299 = vpack.c.b16 %v1278, %v1275
      %v1300 = vpack.c.b16 %v1279, %v1276
      %v1301 = vpack.c.b16 %v1283, %v1280
      %v1302 = vpack.c.b16 %v1284, %v1281
      %v1303 = vpack.c.b16 %v1285, %v1282
      %v1304 = vpack.c.b16 %v1289, %v1286
      %v1305 = vpack.c.b16 %v1290, %v1287
      %v1306 = vpack.c.b16 %v1291, %v1288
      %v1307 = vpack.c.b16 %v1295, %v1292
      %v1308 = vpack.c.b16 %v1296, %v1293
      %v1309 = vpack.c.b16 %v1297, %v1294
      %v1370 = vunpack.c.l.b16 %v1210
      %v1371 = vunpack.c.l.b16 %v1211
      %v1372 = vunpack.c.l.b16 %v1212
      %v1373 = vunpack.c.l.b16 %v1213
      %v1374 = vunpack.c.l.b16 %v1214
      %v1375 = vunpack.c.l.b16 %v1215
      %v1376 = vunpack.c.l.b16 %v1216
      %v1377 = vunpack.c.l.b16 %v1217
      %v1378 = vunpack.c.l.b16 %v1218
      %v1379 = vunpack.c.l.b16 %v1219
      %v1380 = vunpack.c.l.b16 %v1220
      %v1381 = vunpack.c.l.b16 %v1221
      %v1382 = vunpack.c.l.b16 %v1222
      %v1383 = vunpack.c.l.b16 %v1223
      %v1384 = vunpack.c.l.b16 %v1224
      %v1385 = vunpack.c.l.b16 %v1225
      %v1386 = vunpack.c.l.b16 %v1226
      %v1387 = vunpack.c.l.b16 %v1227
      %v1388 = vunpack.c.l.b16 %v1228
      %v1389 = vunpack.c.l.b16 %v1229
      %v1390 = vunpack.c.l.b16 %v1230
      %v1391 = vunpack.c.l.b16 %v1231
      %v1392 = vunpack.c.l.b16 %v1232
      %v1393 = vunpack.c.l.b16 %v1233
      %v1394 = vunpack.c.l.b16 %v1234
      %v1395 = vunpack.c.l.b16 %v1235
      %v1396 = vunpack.c.l.b16 %v1236
      %v1397 = vunpack.c.l.b16 %v1237
      %v1398 = vunpack.c.l.b16 %v1238
      %v1399 = vunpack.c.l.b16 %v1239
      %v1400 = vunpack.c.l.b16 %v1240
      %v1401 = vunpack.c.l.b16 %v1241
      %v1402 = vunpack.c.l.b16 %v1242
      %v1403 = vunpack.c.l.b16 %v1243
      %v1404 = vunpack.c.l.b16 %v1244
      %v1405 = vunpack.c.l.b16 %v1245
      %v1406 = vunpack.c.l.b16 %v1246
      %v1407 = vunpack.c.l.b16 %v1247
      %v1408 = vunpack.c.l.b16 %v1248
      %v1409 = vunpack.c.l.b16 %v1249
      %v1410 = vunpack.c.l.b16 %v1250
      %v1411 = vunpack.c.l.b16 %v1251
      %v1412 = vunpack.c.l.b16 %v1252
      %v1413 = vunpack.c.l.b16 %v1253
      %v1414 = vunpack.c.l.b16 %v1254
      %v1415 = vunpack.c.l.b16 %v1255
      %v1416 = vunpack.c.l.b16 %v1256
      %v1417 = vunpack.c.l.b16 %v1257
      %v1418 = vpack.c.b16 %v1371, %v1370
      %v1419 = vpack.c.b16 %v1373, %v1372
      %v1420 = vpack.c.b16 %v1375, %v1374
      %v1421 = vpack.c.b16 %v1377, %v1376
      %v1422 = vpack.c.b16 %v1379, %v1378
      %v1423 = vpack.c.b16 %v1381, %v1380
      %v1424 = vpack.c.b16 %v1383, %v1382
      %v1425 = vpack.c.b16 %v1385, %v1384
      %v1426 = vpack.c.b16 %v1387, %v1386
      %v1427 = vpack.c.b16 %v1389, %v1388
      %v1428 = vpack.c.b16 %v1391, %v1390
      %v1429 = vpack.c.b16 %v1393, %v1392
      %v1430 = vpack.c.b16 %v1395, %v1394
      %v1431 = vpack.c.b16 %v1397, %v1396
      %v1432 = vpack.c.b16 %v1399, %v1398
      %v1433 = vpack.c.b16 %v1401, %v1400
      %v1434 = vpack.c.b16 %v1403, %v1402
      %v1435 = vpack.c.b16 %v1405, %v1404
      %v1436 = vpack.c.b16 %v1407, %v1406
      %v1437 = vpack.c.b16 %v1409, %v1408
      %v1438 = vpack.c.b16 %v1411, %v1410
      %v1439 = vpack.c.b16 %v1413, %v1412
      %v1440 = vpack.c.b16 %v1415, %v1414
      %v1441 = vpack.c.b16 %v1417, %v1416
      %1466 = vmatprep.subr.bf16.mxu0 0
      %1467 = vmatpush1.bf16.msra.mxu0 %v1418
      %1468 = vmatprep.subr.bf16.mxu0 0
      %1469 = vmatpush1.bf16.msra.mxu0 %v1419
      %1470 = vmatprep.subr.bf16.mxu0 0
      %1471 = vmatpush1.bf16.msra.mxu0 %v1420
      %1472 = vmatprep.subr.bf16.mxu0 0
      %1473 = vmatpush1.bf16.msra.mxu0 %v1421
      %1474 = vmatprep.subr.bf16.mxu0 0
      %1475 = vmatpush1.bf16.msra.mxu0 %v1422
      %1476 = vmatprep.subr.bf16.mxu0 0
      %1477 = vmatpush1.bf16.msra.mxu0 %v1423
      %1478 = vmatprep.subr.bf16.mxu0 0
      %1479 = vmatpush1.bf16.msra.mxu0 %v1424
      %1480 = vmatprep.subr.bf16.mxu0 0
      %1481 = vmatpush1.bf16.msra.mxu0 %v1425
      %1482 = vmatprep.subr.bf16.mxu0 0
      %1483 = vmatpush1.bf16.msra.mxu0 %v1426
      %1484 = vmatprep.subr.bf16.mxu0 0
      %1485 = vmatpush1.bf16.msra.mxu0 %v1427
      %1486 = vmatprep.subr.bf16.mxu0 0
      %1487 = vmatpush1.bf16.msra.mxu0 %v1428
      %1488 = vmatprep.subr.bf16.mxu0 0
      %1489 = vmatpush1.bf16.msra.mxu0 %v1429
      %1490 = vmatprep.subr.bf16.mxu0 0
      %1491 = vmatpush1.bf16.msra.mxu0 %v1430
      %1492 = vmatprep.subr.bf16.mxu0 0
      %1493 = vmatpush1.bf16.msra.mxu0 %v1431
      %1494 = vmatprep.subr.bf16.mxu0 0
      %1495 = vmatpush1.bf16.msra.mxu0 %v1432
      %1496 = vmatprep.subr.bf16.mxu0 0
      %1497 = vmatpush1.bf16.msra.mxu0 %v1433
      %1498 = vmatprep.mubr.bf16.mxu0 %v1299
      %1499 = vmatmul.mubr.bf16.gmra.mrb[0].mxu0 %v1298
      %v1500 = vpop.f32.mrb[0].mxu0
      %v1501 = vadd.f32 0.0, %v1500
      %v1502 = vpop.f32.mrb[0].mxu0
      %v1503 = vpop.f32.mrb[0].mxu0
      %v1504 = vadd.f32 0.0, %v1503
      %v1505 = vpop.f32.mrb[0].mxu0
      %1506 = vmatprep.mubr.bf16.mxu0 %v1302
      %1507 = vmatmul.mubr.bf16.gmra.mrb[0].mxu0 %v1301
      %v1508 = vpop.f32.mrb[0].mxu0
      %v1509 = vadd.f32 0.0, %v1508
      %v1510 = vpop.f32.mrb[0].mxu0
      %v1511 = vpop.f32.mrb[0].mxu0
      %v1512 = vadd.f32 0.0, %v1511
      %v1513 = vpop.f32.mrb[0].mxu0
      %1514 = vmatprep.mubr.bf16.mxu0 %v1305
      %1515 = vmatmul.mubr.bf16.gmra.mrb[0].mxu0 %v1304
      %v1516 = vpop.f32.mrb[0].mxu0
      %v1517 = vadd.f32 0.0, %v1516
      %v1518 = vpop.f32.mrb[0].mxu0
      %v1519 = vpop.f32.mrb[0].mxu0
      %v1520 = vadd.f32 0.0, %v1519
      %v1521 = vpop.f32.mrb[0].mxu0
      %1522 = vmatprep.mubr.bf16.mxu0 %v1308
      %1523 = vmatmul.mubr.bf16.gmra.mrb[0].mxu0 %v1307
      %v1524 = vpop.f32.mrb[0].mxu0
      %v1525 = vadd.f32 0.0, %v1524
      %v1526 = vpop.f32.mrb[0].mxu0
      %v1527 = vpop.f32.mrb[0].mxu0
      %v1528 = vadd.f32 0.0, %v1527
      %v1529 = vpop.f32.mrb[0].mxu0
      %1530 = vdwg.mxu0
      %1531 = vmatprep.subr.bf16.mxu0 0
      %1532 = vmatpush1.bf16.msra.mxu0 %v1434
      %1533 = vmatprep.subr.bf16.mxu0 0
      %1534 = vmatpush1.bf16.msra.mxu0 %v1435
      %1535 = vmatprep.subr.bf16.mxu0 0
      %1536 = vmatpush1.bf16.msra.mxu0 %v1436
      %1537 = vmatprep.subr.bf16.mxu0 0
      %1538 = vmatpush1.bf16.msra.mxu0 %v1437
      %1539 = vmatprep.subr.bf16.mxu0 0
      %1540 = vmatpush1.bf16.msra.mxu0 %v1438
      %1541 = vmatprep.subr.bf16.mxu0 0
      %1542 = vmatpush1.bf16.msra.mxu0 %v1439
      %1543 = vmatprep.subr.bf16.mxu0 0
      %1544 = vmatpush1.bf16.msra.mxu0 %v1440
      %1545 = vmatprep.subr.bf16.mxu0 0
      %1546 = vmatpush1.bf16.msra.mxu0 %v1441
      %1547 = vmatprep.subr.bf16.mxu0 0
      %1548 = vmatpush1.bf16.msra.mxu0 0
      %1549 = vmatprep.subr.bf16.mxu0 0
      %1550 = vmatpush1.bf16.msra.mxu0 0
      %1551 = vmatprep.subr.bf16.mxu0 0
      %1552 = vmatpush1.bf16.msra.mxu0 0
      %1553 = vmatprep.subr.bf16.mxu0 0
      %1554 = vmatpush1.bf16.msra.mxu0 0
      %1555 = vmatprep.subr.bf16.mxu0 0
      %1556 = vmatpush1.bf16.msra.mxu0 0
      %1557 = vmatprep.subr.bf16.mxu0 0
      %1558 = vmatpush1.bf16.msra.mxu0 0
      %1559 = vmatprep.subr.bf16.mxu0 0
      %1560 = vmatpush1.bf16.msra.mxu0 0
      %1561 = vmatprep.subr.bf16.mxu0 0
      %1562 = vmatpush1.bf16.msra.mxu0 0
      %1563 = vmatprep.mubr.bf16.mxu0 0
      %1564 = vmatmul.mubr.bf16.gmra.mrb[0].mxu0 %v1300
      %v1565 = vpop.f32.mrb[0].mxu0
      %v1566 = vadd.f32 %v1501, %v1565
      %v1567 = vpop.f32.mrb[0].mxu0
      %v1568 = vpop.f32.mrb[0].mxu0
      %v1569 = vadd.f32 %v1504, %v1568
      %v1570 = vpop.f32.mrb[0].mxu0
      %1571 = vmatprep.mubr.bf16.mxu0 0
      %1572 = vmatmul.mubr.bf16.gmra.mrb[0].mxu0 %v1303
      %v1573 = vpop.f32.mrb[0].mxu0
      %v1574 = vadd.f32 %v1509, %v1573
      %v1575 = vpop.f32.mrb[0].mxu0
      %v1576 = vpop.f32.mrb[0].mxu0
      %v1577 = vadd.f32 %v1512, %v1576
      %v1578 = vpop.f32.mrb[0].mxu0
      %1579 = vmatprep.mubr.bf16.mxu0 0
      %1580 = vmatmul.mubr.bf16.gmra.mrb[0].mxu0 %v1306
      %v1581 = vpop.f32.mrb[0].mxu0
      %v1582 = vadd.f32 %v1517, %v1581
      %v1583 = vpop.f32.mrb[0].mxu0
      %v1584 = vpop.f32.mrb[0].mxu0
      %v1585 = vadd.f32 %v1520, %v1584
      %v1586 = vpop.f32.mrb[0].mxu0
      %1587 = vmatprep.mubr.bf16.mxu0 0
      %1588 = vmatmul.mubr.bf16.gmra.mrb[0].mxu0 %v1309
      %v1589 = vpop.f32.mrb[0].mxu0
      %v1590 = vadd.f32 %v1525, %v1589
      %v1591 = vpop.f32.mrb[0].mxu0
      %v1592 = vpop.f32.mrb[0].mxu0
      %v1593 = vadd.f32 %v1528, %v1592
      %v1594 = vpop.f32.mrb[0].mxu0
      %1595 = vdwg.mxu0
      %v1612 = vunpack.c.l.b16 %v1129
      %v1613 = vunpack.c.h.b16 %v1129
      %v1614 = vunpack.c.l.b16 %v1130
      %v1615 = vunpack.c.l.b16 %v1131
      %v1616 = vunpack.c.h.b16 %v1131
      %v1617 = vunpack.c.l.b16 %v1132
      %v1618 = vunpack.c.l.b16 %v1133
      %v1619 = vunpack.c.h.b16 %v1133
      %v1620 = vunpack.c.l.b16 %v1134
      %v1621 = vunpack.c.l.b16 %v1135
      %v1622 = vunpack.c.h.b16 %v1135
      %v1623 = vunpack.c.l.b16 %v1136
      %v1624 = vunpack.c.l.b16 %v1137
      %v1625 = vunpack.c.h.b16 %v1137
      %v1626 = vunpack.c.l.b16 %v1138
      %v1627 = vunpack.c.l.b16 %v1139
      %v1628 = vunpack.c.h.b16 %v1139
      %v1629 = vunpack.c.l.b16 %v1140
      %v1630 = vunpack.c.l.b16 %v1141
      %v1631 = vunpack.c.h.b16 %v1141
      %v1632 = vunpack.c.l.b16 %v1142
      %v1633 = vunpack.c.l.b16 %v1143
      %v1634 = vunpack.c.h.b16 %v1143
      %v1635 = vunpack.c.l.b16 %v1144
      %v1636 = vpack.c.b16 %v1615, %v1612
      %v1637 = vpack.c.b16 %v1616, %v1613
      %v1638 = vpack.c.b16 %v1617, %v1614
      %v1639 = vpack.c.b16 %v1621, %v1618
      %v1640 = vpack.c.b16 %v1622, %v1619
      %v1641 = vpack.c.b16 %v1623, %v1620
      %v1642 = vpack.c.b16 %v1627, %v1624
      %v1643 = vpack.c.b16 %v1628, %v1625
      %v1644 = vpack.c.b16 %v1629, %v1626
      %v1645 = vpack.c.b16 %v1633, %v1630
      %v1646 = vpack.c.b16 %v1634, %v1631
      %v1647 = vpack.c.b16 %v1635, %v1632
      %v1708 = vunpack.c.l.b16 %v1145
      %v1709 = vunpack.c.l.b16 %v1146
      %v1710 = vunpack.c.l.b16 %v1147
      %v1711 = vunpack.c.l.b16 %v1148
      %v1712 = vunpack.c.l.b16 %v1149
      %v1713 = vunpack.c.l.b16 %v1150
      %v1714 = vunpack.c.l.b16 %v1151
      %v1715 = vunpack.c.l.b16 %v1152
      %v1716 = vunpack.c.l.b16 %v1153
      %v1717 = vunpack.c.l.b16 %v1154
      %v1718 = vunpack.c.l.b16 %v1155
      %v1719 = vunpack.c.l.b16 %v1156
      %v1720 = vunpack.c.l.b16 %v1157
      %v1721 = vunpack.c.l.b16 %v1158
      %v1722 = vunpack.c.l.b16 %v1159
      %v1723 = vunpack.c.l.b16 %v1160
      %v1724 = vunpack.c.l.b16 %v1161
      %v1725 = vunpack.c.l.b16 %v1162
      %v1726 = vunpack.c.l.b16 %v1163
      %v1727 = vunpack.c.l.b16 %v1164
      %v1728 = vunpack.c.l.b16 %v1165
      %v1729 = vunpack.c.l.b16 %v1166
      %v1730 = vunpack.c.l.b16 %v1167
      %v1731 = vunpack.c.l.b16 %v1168
      %v1732 = vunpack.c.l.b16 %v1169
      %v1733 = vunpack.c.l.b16 %v1170
      %v1734 = vunpack.c.l.b16 %v1171
      %v1735 = vunpack.c.l.b16 %v1172
      %v1736 = vunpack.c.l.b16 %v1173
      %v1737 = vunpack.c.l.b16 %v1174
      %v1738 = vunpack.c.l.b16 %v1175
      %v1739 = vunpack.c.l.b16 %v1176
      %v1740 = vunpack.c.l.b16 %v1177
      %v1741 = vunpack.c.l.b16 %v1178
      %v1742 = vunpack.c.l.b16 %v1179
      %v1743 = vunpack.c.l.b16 %v1180
      %v1744 = vunpack.c.l.b16 %v1181
      %v1745 = vunpack.c.l.b16 %v1182
      %v1746 = vunpack.c.l.b16 %v1183
      %v1747 = vunpack.c.l.b16 %v1184
      %v1748 = vunpack.c.l.b16 %v1185
      %v1749 = vunpack.c.l.b16 %v1186
      %v1750 = vunpack.c.l.b16 %v1187
      %v1751 = vunpack.c.l.b16 %v1188
      %v1752 = vunpack.c.l.b16 %v1189
      %v1753 = vunpack.c.l.b16 %v1190
      %v1754 = vunpack.c.l.b16 %v1191
      %v1755 = vunpack.c.l.b16 %v1192
      %v1756 = vpack.c.b16 %v1709, %v1708
      %v1757 = vpack.c.b16 %v1711, %v1710
      %v1758 = vpack.c.b16 %v1713, %v1712
      %v1759 = vpack.c.b16 %v1715, %v1714
      %v1760 = vpack.c.b16 %v1717, %v1716
      %v1761 = vpack.c.b16 %v1719, %v1718
      %v1762 = vpack.c.b16 %v1721, %v1720
      %v1763 = vpack.c.b16 %v1723, %v1722
      %v1764 = vpack.c.b16 %v1725, %v1724
      %v1765 = vpack.c.b16 %v1727, %v1726
      %v1766 = vpack.c.b16 %v1729, %v1728
      %v1767 = vpack.c.b16 %v1731, %v1730
      %v1768 = vpack.c.b16 %v1733, %v1732
      %v1769 = vpack.c.b16 %v1735, %v1734
      %v1770 = vpack.c.b16 %v1737, %v1736
      %v1771 = vpack.c.b16 %v1739, %v1738
      %v1772 = vpack.c.b16 %v1741, %v1740
      %v1773 = vpack.c.b16 %v1743, %v1742
      %v1774 = vpack.c.b16 %v1745, %v1744
      %v1775 = vpack.c.b16 %v1747, %v1746
      %v1776 = vpack.c.b16 %v1749, %v1748
      %v1777 = vpack.c.b16 %v1751, %v1750
      %v1778 = vpack.c.b16 %v1753, %v1752
      %v1779 = vpack.c.b16 %v1755, %v1754
      %1804 = vmatprep.subr.bf16.mxu0 0
      %1805 = vmatpush1.bf16.msra.mxu0 %v1756
      %1806 = vmatprep.subr.bf16.mxu0 0
      %1807 = vmatpush1.bf16.msra.mxu0 %v1757
      %1808 = vmatprep.subr.bf16.mxu0 0
      %1809 = vmatpush1.bf16.msra.mxu0 %v1758
      %1810 = vmatprep.subr.bf16.mxu0 0
      %1811 = vmatpush1.bf16.msra.mxu0 %v1759
      %1812 = vmatprep.subr.bf16.mxu0 0
      %1813 = vmatpush1.bf16.msra.mxu0 %v1760
      %1814 = vmatprep.subr.bf16.mxu0 0
      %1815 = vmatpush1.bf16.msra.mxu0 %v1761
      %1816 = vmatprep.subr.bf16.mxu0 0
      %1817 = vmatpush1.bf16.msra.mxu0 %v1762
      %1818 = vmatprep.subr.bf16.mxu0 0
      %1819 = vmatpush1.bf16.msra.mxu0 %v1763
      %1820 = vmatprep.subr.bf16.mxu0 0
      %1821 = vmatpush1.bf16.msra.mxu0 %v1764
      %1822 = vmatprep.subr.bf16.mxu0 0
      %1823 = vmatpush1.bf16.msra.mxu0 %v1765
      %1824 = vmatprep.subr.bf16.mxu0 0
      %1825 = vmatpush1.bf16.msra.mxu0 %v1766
      %1826 = vmatprep.subr.bf16.mxu0 0
      %1827 = vmatpush1.bf16.msra.mxu0 %v1767
      %1828 = vmatprep.subr.bf16.mxu0 0
      %1829 = vmatpush1.bf16.msra.mxu0 %v1768
      %1830 = vmatprep.subr.bf16.mxu0 0
      %1831 = vmatpush1.bf16.msra.mxu0 %v1769
      %1832 = vmatprep.subr.bf16.mxu0 0
      %1833 = vmatpush1.bf16.msra.mxu0 %v1770
      %1834 = vmatprep.subr.bf16.mxu0 0
      %1835 = vmatpush1.bf16.msra.mxu0 %v1771
      %1836 = vmatprep.mubr.bf16.mxu0 %v1637
      %1837 = vmatmul.mubr.bf16.gmra.mrb[0].mxu0 %v1636
      %v1838 = vpop.f32.mrb[0].mxu0
      %v1839 = vadd.f32 %v1566, %v1838
      %v1840 = vpop.f32.mrb[0].mxu0
      %v1841 = vpop.f32.mrb[0].mxu0
      %v1842 = vadd.f32 %v1569, %v1841
      %v1843 = vpop.f32.mrb[0].mxu0
      %1844 = vmatprep.mubr.bf16.mxu0 %v1640
      %1845 = vmatmul.mubr.bf16.gmra.mrb[0].mxu0 %v1639
      %v1846 = vpop.f32.mrb[0].mxu0
      %v1847 = vadd.f32 %v1574, %v1846
      %v1848 = vpop.f32.mrb[0].mxu0
      %v1849 = vpop.f32.mrb[0].mxu0
      %v1850 = vadd.f32 %v1577, %v1849
      %v1851 = vpop.f32.mrb[0].mxu0
      %1852 = vmatprep.mubr.bf16.mxu0 %v1643
      %1853 = vmatmul.mubr.bf16.gmra.mrb[0].mxu0 %v1642
      %v1854 = vpop.f32.mrb[0].mxu0
      %v1855 = vadd.f32 %v1582, %v1854
      %v1856 = vpop.f32.mrb[0].mxu0
      %v1857 = vpop.f32.mrb[0].mxu0
      %v1858 = vadd.f32 %v1585, %v1857
      %v1859 = vpop.f32.mrb[0].mxu0
      %1860 = vmatprep.mubr.bf16.mxu0 %v1646
      %1861 = vmatmul.mubr.bf16.gmra.mrb[0].mxu0 %v1645
      %v1862 = vpop.f32.mrb[0].mxu0
      %v1863 = vadd.f32 %v1590, %v1862
      %v1864 = vpop.f32.mrb[0].mxu0
      %v1865 = vpop.f32.mrb[0].mxu0
      %v1866 = vadd.f32 %v1593, %v1865
      %v1867 = vpop.f32.mrb[0].mxu0
      %1868 = vdwg.mxu0
      %1869 = vmatprep.subr.bf16.mxu0 0
      %1870 = vmatpush1.bf16.msra.mxu0 %v1772
      %1871 = vmatprep.subr.bf16.mxu0 0
      %1872 = vmatpush1.bf16.msra.mxu0 %v1773
      %1873 = vmatprep.subr.bf16.mxu0 0
      %1874 = vmatpush1.bf16.msra.mxu0 %v1774
      %1875 = vmatprep.subr.bf16.mxu0 0
      %1876 = vmatpush1.bf16.msra.mxu0 %v1775
      %1877 = vmatprep.subr.bf16.mxu0 0
      %1878 = vmatpush1.bf16.msra.mxu0 %v1776
      %1879 = vmatprep.subr.bf16.mxu0 0
      %1880 = vmatpush1.bf16.msra.mxu0 %v1777
      %1881 = vmatprep.subr.bf16.mxu0 0
      %1882 = vmatpush1.bf16.msra.mxu0 %v1778
      %1883 = vmatprep.subr.bf16.mxu0 0
      %1884 = vmatpush1.bf16.msra.mxu0 %v1779
      %1885 = vmatprep.subr.bf16.mxu0 0
      %1886 = vmatpush1.bf16.msra.mxu0 0
      %1887 = vmatprep.subr.bf16.mxu0 0
      %1888 = vmatpush1.bf16.msra.mxu0 0
      %1889 = vmatprep.subr.bf16.mxu0 0
      %1890 = vmatpush1.bf16.msra.mxu0 0
      %1891 = vmatprep.subr.bf16.mxu0 0
      %1892 = vmatpush1.bf16.msra.mxu0 0
      %1893 = vmatprep.subr.bf16.mxu0 0
      %1894 = vmatpush1.bf16.msra.mxu0 0
      %1895 = vmatprep.subr.bf16.mxu0 0
      %1896 = vmatpush1.bf16.msra.mxu0 0
      %1897 = vmatprep.subr.bf16.mxu0 0
      %1898 = vmatpush1.bf16.msra.mxu0 0
      %1899 = vmatprep.subr.bf16.mxu0 0
      %1900 = vmatpush1.bf16.msra.mxu0 0
      %1901 = vmatprep.mubr.bf16.mxu0 0
      %1902 = vmatmul.mubr.bf16.gmra.mrb[0].mxu0 %v1638
      %v1903 = vpop.f32.mrb[0].mxu0
      %v1904 = vadd.f32 %v1839, %v1903
      %v1905 = vpop.f32.mrb[0].mxu0
      %v1906 = vpop.f32.mrb[0].mxu0
      %v1907 = vadd.f32 %v1842, %v1906
      %v1908 = vpop.f32.mrb[0].mxu0
      %1909 = vmatprep.mubr.bf16.mxu0 0
      %1910 = vmatmul.mubr.bf16.gmra.mrb[0].mxu0 %v1641
      %v1911 = vpop.f32.mrb[0].mxu0
      %v1912 = vadd.f32 %v1847, %v1911
      %v1913 = vpop.f32.mrb[0].mxu0
      %v1914 = vpop.f32.mrb[0].mxu0
      %v1915 = vadd.f32 %v1850, %v1914
      %v1916 = vpop.f32.mrb[0].mxu0
      %1917 = vmatprep.mubr.bf16.mxu0 0
      %1918 = vmatmul.mubr.bf16.gmra.mrb[0].mxu0 %v1644
      %v1919 = vpop.f32.mrb[0].mxu0
      %v1920 = vadd.f32 %v1855, %v1919
      %v1921 = vpop.f32.mrb[0].mxu0
      %v1922 = vpop.f32.mrb[0].mxu0
      %v1923 = vadd.f32 %v1858, %v1922
      %v1924 = vpop.f32.mrb[0].mxu0
      %1925 = vmatprep.mubr.bf16.mxu0 0
      %1926 = vmatmul.mubr.bf16.gmra.mrb[0].mxu0 %v1647
      %v1927 = vpop.f32.mrb[0].mxu0
      %v1928 = vadd.f32 %v1863, %v1927
      %v1929 = vpop.f32.mrb[0].mxu0
      %v1930 = vpop.f32.mrb[0].mxu0
      %v1931 = vadd.f32 %v1866, %v1930
      %v1932 = vpop.f32.mrb[0].mxu0
      %1933 = vdwg.mxu0
      %s1934 = scalar_lea.vmem [#allocation2], 24
      %v1935 = vld [vmem:[%s1934] sm:$0xff]
      %v1936 = vld [vmem:[%s1934 + $0x8] sm:$0xf]
      %v1937 = vld [vmem:[%s1934 + $0xc] sm:$0xff]
      %v1938 = vld [vmem:[%s1934 + $0x14] sm:$0xf]
      %v1939 = vld [vmem:[%s1934 + $0x18] sm:$0xff]
      %v1940 = vld [vmem:[%s1934 + $0x20] sm:$0xf]
      %v1941 = vld [vmem:[%s1934 + $0x24] sm:$0xff]
      %v1942 = vld [vmem:[%s1934 + $0x2c] sm:$0xf]
      %v1943 = vld [vmem:[%s1934 + $0x30] sm:$0xff]
      %v1944 = vld [vmem:[%s1934 + $0x38] sm:$0xf]
      %v1945 = vld [vmem:[%s1934 + $0x3c] sm:$0xff]
      %v1946 = vld [vmem:[%s1934 + $0x44] sm:$0xf]
      %v1947 = vld [vmem:[%s1934 + $0x48] sm:$0xff]
      %v1948 = vld [vmem:[%s1934 + $0x50] sm:$0xf]
      %v1949 = vld [vmem:[%s1934 + $0x54] sm:$0xff]
      %v1950 = vld [vmem:[%s1934 + $0x5c] sm:$0xf]
      %s1951 = scalar_lea.vmem %s4, 384
      %v1952 = vld [vmem:[%s1951] sm:$0xf]
      %v1953 = vld [vmem:[%s1951 + $0x4] sm:$0xf]
      %v1954 = vld [vmem:[%s1951 + $0x8] sm:$0xf]
      %v1955 = vld [vmem:[%s1951 + $0xc] sm:$0xf]
      %v1956 = vld [vmem:[%s1951 + $0x10] sm:$0xf]
      %v1957 = vld [vmem:[%s1951 + $0x14] sm:$0xf]
      %v1958 = vld [vmem:[%s1951 + $0x18] sm:$0xf]
      %v1959 = vld [vmem:[%s1951 + $0x1c] sm:$0xf]
      %v1960 = vld [vmem:[%s1951 + $0x20] sm:$0xf]
      %v1961 = vld [vmem:[%s1951 + $0x24] sm:$0xf]
      %v1962 = vld [vmem:[%s1951 + $0x28] sm:$0xf]
      %v1963 = vld [vmem:[%s1951 + $0x2c] sm:$0xf]
      %v1964 = vld [vmem:[%s1951 + $0x30] sm:$0xf]
      %v1965 = vld [vmem:[%s1951 + $0x34] sm:$0xf]
      %v1966 = vld [vmem:[%s1951 + $0x38] sm:$0xf]
      %v1967 = vld [vmem:[%s1951 + $0x3c] sm:$0xf]
      %v1968 = vld [vmem:[%s1951 + $0x40] sm:$0xf]
      %v1969 = vld [vmem:[%s1951 + $0x44] sm:$0xf]
      %v1970 = vld [vmem:[%s1951 + $0x48] sm:$0xf]
      %v1971 = vld [vmem:[%s1951 + $0x4c] sm:$0xf]
      %v1972 = vld [vmem:[%s1951 + $0x50] sm:$0xf]
      %v1973 = vld [vmem:[%s1951 + $0x54] sm:$0xf]
      %v1974 = vld [vmem:[%s1951 + $0x58] sm:$0xf]
      %v1975 = vld [vmem:[%s1951 + $0x5c] sm:$0xf]
      %v1976 = vld [vmem:[%s1951 + $0x60] sm:$0xf]
      %v1977 = vld [vmem:[%s1951 + $0x64] sm:$0xf]
      %v1978 = vld [vmem:[%s1951 + $0x68] sm:$0xf]
      %v1979 = vld [vmem:[%s1951 + $0x6c] sm:$0xf]
      %v1980 = vld [vmem:[%s1951 + $0x70] sm:$0xf]
      %v1981 = vld [vmem:[%s1951 + $0x74] sm:$0xf]
      %v1982 = vld [vmem:[%s1951 + $0x78] sm:$0xf]
      %v1983 = vld [vmem:[%s1951 + $0x7c] sm:$0xf]
      %v1984 = vld [vmem:[%s1951 + $0x80] sm:$0xf]
      %v1985 = vld [vmem:[%s1951 + $0x84] sm:$0xf]
      %v1986 = vld [vmem:[%s1951 + $0x88] sm:$0xf]
      %v1987 = vld [vmem:[%s1951 + $0x8c] sm:$0xf]
      %v1988 = vld [vmem:[%s1951 + $0x90] sm:$0xf]
      %v1989 = vld [vmem:[%s1951 + $0x94] sm:$0xf]
      %v1990 = vld [vmem:[%s1951 + $0x98] sm:$0xf]
      %v1991 = vld [vmem:[%s1951 + $0x9c] sm:$0xf]
      %v1992 = vld [vmem:[%s1951 + $0xa0] sm:$0xf]
      %v1993 = vld [vmem:[%s1951 + $0xa4] sm:$0xf]
      %v1994 = vld [vmem:[%s1951 + $0xa8] sm:$0xf]
      %v1995 = vld [vmem:[%s1951 + $0xac] sm:$0xf]
      %v1996 = vld [vmem:[%s1951 + $0xb0] sm:$0xf]
      %v1997 = vld [vmem:[%s1951 + $0xb4] sm:$0xf]
      %v1998 = vld [vmem:[%s1951 + $0xb8] sm:$0xf]
      %v1999 = vld [vmem:[%s1951 + $0xbc] sm:$0xf]
      %v2016 = vunpack.c.l.b16 %v1935
      %v2017 = vunpack.c.h.b16 %v1935
      %v2018 = vunpack.c.l.b16 %v1936
      %v2019 = vunpack.c.l.b16 %v1937
      %v2020 = vunpack.c.h.b16 %v1937
      %v2021 = vunpack.c.l.b16 %v1938
      %v2022 = vunpack.c.l.b16 %v1939
      %v2023 = vunpack.c.h.b16 %v1939
      %v2024 = vunpack.c.l.b16 %v1940
      %v2025 = vunpack.c.l.b16 %v1941
      %v2026 = vunpack.c.h.b16 %v1941
      %v2027 = vunpack.c.l.b16 %v1942
      %v2028 = vunpack.c.l.b16 %v1943
      %v2029 = vunpack.c.h.b16 %v1943
      %v2030 = vunpack.c.l.b16 %v1944
      %v2031 = vunpack.c.l.b16 %v1945
      %v2032 = vunpack.c.h.b16 %v1945
      %v2033 = vunpack.c.l.b16 %v1946
      %v2034 = vunpack.c.l.b16 %v1947
      %v2035 = vunpack.c.h.b16 %v1947
      %v2036 = vunpack.c.l.b16 %v1948
      %v2037 = vunpack.c.l.b16 %v1949
      %v2038 = vunpack.c.h.b16 %v1949
      %v2039 = vunpack.c.l.b16 %v1950
      %v2040 = vpack.c.b16 %v2019, %v2016
      %v2041 = vpack.c.b16 %v2020, %v2017
      %v2042 = vpack.c.b16 %v2021, %v2018
      %v2043 = vpack.c.b16 %v2025, %v2022
      %v2044 = vpack.c.b16 %v2026, %v2023
      %v2045 = vpack.c.b16 %v2027, %v2024
      %v2046 = vpack.c.b16 %v2031, %v2028
      %v2047 = vpack.c.b16 %v2032, %v2029
      %v2048 = vpack.c.b16 %v2033, %v2030
      %v2049 = vpack.c.b16 %v2037, %v2034
      %v2050 = vpack.c.b16 %v2038, %v2035
      %v2051 = vpack.c.b16 %v2039, %v2036
      %v2112 = vunpack.c.l.b16 %v1952
      %v2113 = vunpack.c.l.b16 %v1953
      %v2114 = vunpack.c.l.b16 %v1954
      %v2115 = vunpack.c.l.b16 %v1955
      %v2116 = vunpack.c.l.b16 %v1956
      %v2117 = vunpack.c.l.b16 %v1957
      %v2118 = vunpack.c.l.b16 %v1958
      %v2119 = vunpack.c.l.b16 %v1959
      %v2120 = vunpack.c.l.b16 %v1960
      %v2121 = vunpack.c.l.b16 %v1961
      %v2122 = vunpack.c.l.b16 %v1962
      %v2123 = vunpack.c.l.b16 %v1963
      %v2124 = vunpack.c.l.b16 %v1964
      %v2125 = vunpack.c.l.b16 %v1965
      %v2126 = vunpack.c.l.b16 %v1966
      %v2127 = vunpack.c.l.b16 %v1967
      %v2128 = vunpack.c.l.b16 %v1968
      %v2129 = vunpack.c.l.b16 %v1969
      %v2130 = vunpack.c.l.b16 %v1970
      %v2131 = vunpack.c.l.b16 %v1971
      %v2132 = vunpack.c.l.b16 %v1972
      %v2133 = vunpack.c.l.b16 %v1973
      %v2134 = vunpack.c.l.b16 %v1974
      %v2135 = vunpack.c.l.b16 %v1975
      %v2136 = vunpack.c.l.b16 %v1976
      %v2137 = vunpack.c.l.b16 %v1977
      %v2138 = vunpack.c.l.b16 %v1978
      %v2139 = vunpack.c.l.b16 %v1979
      %v2140 = vunpack.c.l.b16 %v1980
      %v2141 = vunpack.c.l.b16 %v1981
      %v2142 = vunpack.c.l.b16 %v1982
      %v2143 = vunpack.c.l.b16 %v1983
      %v2144 = vunpack.c.l.b16 %v1984
      %v2145 = vunpack.c.l.b16 %v1985
      %v2146 = vunpack.c.l.b16 %v1986
      %v2147 = vunpack.c.l.b16 %v1987
      %v2148 = vunpack.c.l.b16 %v1988
      %v2149 = vunpack.c.l.b16 %v1989
      %v2150 = vunpack.c.l.b16 %v1990
      %v2151 = vunpack.c.l.b16 %v1991
      %v2152 = vunpack.c.l.b16 %v1992
      %v2153 = vunpack.c.l.b16 %v1993
      %v2154 = vunpack.c.l.b16 %v1994
      %v2155 = vunpack.c.l.b16 %v1995
      %v2156 = vunpack.c.l.b16 %v1996
      %v2157 = vunpack.c.l.b16 %v1997
      %v2158 = vunpack.c.l.b16 %v1998
      %v2159 = vunpack.c.l.b16 %v1999
      %v2160 = vpack.c.b16 %v2113, %v2112
      %v2161 = vpack.c.b16 %v2115, %v2114
      %v2162 = vpack.c.b16 %v2117, %v2116
      %v2163 = vpack.c.b16 %v2119, %v2118
      %v2164 = vpack.c.b16 %v2121, %v2120
      %v2165 = vpack.c.b16 %v2123, %v2122
      %v2166 = vpack.c.b16 %v2125, %v2124
      %v2167 = vpack.c.b16 %v2127, %v2126
      %v2168 = vpack.c.b16 %v2129, %v2128
      %v2169 = vpack.c.b16 %v2131, %v2130
      %v2170 = vpack.c.b16 %v2133, %v2132
      %v2171 = vpack.c.b16 %v2135, %v2134
      %v2172 = vpack.c.b16 %v2137, %v2136
      %v2173 = vpack.c.b16 %v2139, %v2138
      %v2174 = vpack.c.b16 %v2141, %v2140
      %v2175 = vpack.c.b16 %v2143, %v2142
      %v2176 = vpack.c.b16 %v2145, %v2144
      %v2177 = vpack.c.b16 %v2147, %v2146
      %v2178 = vpack.c.b16 %v2149, %v2148
      %v2179 = vpack.c.b16 %v2151, %v2150
      %v2180 = vpack.c.b16 %v2153, %v2152
      %v2181 = vpack.c.b16 %v2155, %v2154
      %v2182 = vpack.c.b16 %v2157, %v2156
      %v2183 = vpack.c.b16 %v2159, %v2158
      %2208 = vmatprep.subr.bf16.mxu0 0
      %2209 = vmatpush1.bf16.msra.mxu0 %v2160
      %2210 = vmatprep.subr.bf16.mxu0 0
      %2211 = vmatpush1.bf16.msra.mxu0 %v2161
      %2212 = vmatprep.subr.bf16.mxu0 0
      %2213 = vmatpush1.bf16.msra.mxu0 %v2162
      %2214 = vmatprep.subr.bf16.mxu0 0
      %2215 = vmatpush1.bf16.msra.mxu0 %v2163
      %2216 = vmatprep.subr.bf16.mxu0 0
      %2217 = vmatpush1.bf16.msra.mxu0 %v2164
      %2218 = vmatprep.subr.bf16.mxu0 0
      %2219 = vmatpush1.bf16.msra.mxu0 %v2165
      %2220 = vmatprep.subr.bf16.mxu0 0
      %2221 = vmatpush1.bf16.msra.mxu0 %v2166
      %2222 = vmatprep.subr.bf16.mxu0 0
      %2223 = vmatpush1.bf16.msra.mxu0 %v2167
      %2224 = vmatprep.subr.bf16.mxu0 0
      %2225 = vmatpush1.bf16.msra.mxu0 %v2168
      %2226 = vmatprep.subr.bf16.mxu0 0
      %2227 = vmatpush1.bf16.msra.mxu0 %v2169
      %2228 = vmatprep.subr.bf16.mxu0 0
      %2229 = vmatpush1.bf16.msra.mxu0 %v2170
      %2230 = vmatprep.subr.bf16.mxu0 0
      %2231 = vmatpush1.bf16.msra.mxu0 %v2171
      %2232 = vmatprep.subr.bf16.mxu0 0
      %2233 = vmatpush1.bf16.msra.mxu0 %v2172
      %2234 = vmatprep.subr.bf16.mxu0 0
      %2235 = vmatpush1.bf16.msra.mxu0 %v2173
      %2236 = vmatprep.subr.bf16.mxu0 0
      %2237 = vmatpush1.bf16.msra.mxu0 %v2174
      %2238 = vmatprep.subr.bf16.mxu0 0
      %2239 = vmatpush1.bf16.msra.mxu0 %v2175
      %2240 = vmatprep.mubr.bf16.mxu0 %v2041
      %2241 = vmatmul.mubr.bf16.gmra.mrb[0].mxu0 %v2040
      %v2242 = vpop.f32.mrb[0].mxu0
      %v2243 = vadd.f32 0.0, %v2242
      %v2244 = vpop.f32.mrb[0].mxu0
      %v2245 = vpop.f32.mrb[0].mxu0
      %v2246 = vadd.f32 0.0, %v2245
      %v2247 = vpop.f32.mrb[0].mxu0
      %2248 = vmatprep.mubr.bf16.mxu0 %v2044
      %2249 = vmatmul.mubr.bf16.gmra.mrb[0].mxu0 %v2043
      %v2250 = vpop.f32.mrb[0].mxu0
      %v2251 = vadd.f32 0.0, %v2250
      %v2252 = vpop.f32.mrb[0].mxu0
      %v2253 = vpop.f32.mrb[0].mxu0
      %v2254 = vadd.f32 0.0, %v2253
      %v2255 = vpop.f32.mrb[0].mxu0
      %2256 = vmatprep.mubr.bf16.mxu0 %v2047
      %2257 = vmatmul.mubr.bf16.gmra.mrb[0].mxu0 %v2046
      %v2258 = vpop.f32.mrb[0].mxu0
      %v2259 = vadd.f32 0.0, %v2258
      %v2260 = vpop.f32.mrb[0].mxu0
      %v2261 = vpop.f32.mrb[0].mxu0
      %v2262 = vadd.f32 0.0, %v2261
      %v2263 = vpop.f32.mrb[0].mxu0
      %2264 = vmatprep.mubr.bf16.mxu0 %v2050
      %2265 = vmatmul.mubr.bf16.gmra.mrb[0].mxu0 %v2049
      %v2266 = vpop.f32.mrb[0].mxu0
      %v2267 = vadd.f32 0.0, %v2266
      %v2268 = vpop.f32.mrb[0].mxu0
      %v2269 = vpop.f32.mrb[0].mxu0
      %v2270 = vadd.f32 0.0, %v2269
      %v2271 = vpop.f32.mrb[0].mxu0
      %2272 = vdwg.mxu0
      %2273 = vmatprep.subr.bf16.mxu0 0
      %2274 = vmatpush1.bf16.msra.mxu0 %v2176
      %2275 = vmatprep.subr.bf16.mxu0 0
      %2276 = vmatpush1.bf16.msra.mxu0 %v2177
      %2277 = vmatprep.subr.bf16.mxu0 0
      %2278 = vmatpush1.bf16.msra.mxu0 %v2178
      %2279 = vmatprep.subr.bf16.mxu0 0
      %2280 = vmatpush1.bf16.msra.mxu0 %v2179
      %2281 = vmatprep.subr.bf16.mxu0 0
      %2282 = vmatpush1.bf16.msra.mxu0 %v2180
      %2283 = vmatprep.subr.bf16.mxu0 0
      %2284 = vmatpush1.bf16.msra.mxu0 %v2181
      %2285 = vmatprep.subr.bf16.mxu0 0
      %2286 = vmatpush1.bf16.msra.mxu0 %v2182
      %2287 = vmatprep.subr.bf16.mxu0 0
      %2288 = vmatpush1.bf16.msra.mxu0 %v2183
      %2289 = vmatprep.subr.bf16.mxu0 0
      %2290 = vmatpush1.bf16.msra.mxu0 0
      %2291 = vmatprep.subr.bf16.mxu0 0
      %2292 = vmatpush1.bf16.msra.mxu0 0
      %2293 = vmatprep.subr.bf16.mxu0 0
      %2294 = vmatpush1.bf16.msra.mxu0 0
      %2295 = vmatprep.subr.bf16.mxu0 0
      %2296 = vmatpush1.bf16.msra.mxu0 0
      %2297 = vmatprep.subr.bf16.mxu0 0
      %2298 = vmatpush1.bf16.msra.mxu0 0
      %2299 = vmatprep.subr.bf16.mxu0 0
      %2300 = vmatpush1.bf16.msra.mxu0 0
      %2301 = vmatprep.subr.bf16.mxu0 0
      %2302 = vmatpush1.bf16.msra.mxu0 0
      %2303 = vmatprep.subr.bf16.mxu0 0
      %2304 = vmatpush1.bf16.msra.mxu0 0
      %2305 = vmatprep.mubr.bf16.mxu0 0
      %2306 = vmatmul.mubr.bf16.gmra.mrb[0].mxu0 %v2042
      %v2307 = vpop.f32.mrb[0].mxu0
      %v2308 = vadd.f32 %v2243, %v2307
      %v2309 = vpop.f32.mrb[0].mxu0
      %v2310 = vpop.f32.mrb[0].mxu0
      %v2311 = vadd.f32 %v2246, %v2310
      %v2312 = vpop.f32.mrb[0].mxu0
      %2313 = vmatprep.mubr.bf16.mxu0 0
      %2314 = vmatmul.mubr.bf16.gmra.mrb[0].mxu0 %v2045
      %v2315 = vpop.f32.mrb[0].mxu0
      %v2316 = vadd.f32 %v2251, %v2315
      %v2317 = vpop.f32.mrb[0].mxu0
      %v2318 = vpop.f32.mrb[0].mxu0
      %v2319 = vadd.f32 %v2254, %v2318
      %v2320 = vpop.f32.mrb[0].mxu0
      %2321 = vmatprep.mubr.bf16.mxu0 0
      %2322 = vmatmul.mubr.bf16.gmra.mrb[0].mxu0 %v2048
      %v2323 = vpop.f32.mrb[0].mxu0
      %v2324 = vadd.f32 %v2259, %v2323
      %v2325 = vpop.f32.mrb[0].mxu0
      %v2326 = vpop.f32.mrb[0].mxu0
      %v2327 = vadd.f32 %v2262, %v2326
      %v2328 = vpop.f32.mrb[0].mxu0
      %2329 = vmatprep.mubr.bf16.mxu0 0
      %2330 = vmatmul.mubr.bf16.gmra.mrb[0].mxu0 %v2051
      %v2331 = vpop.f32.mrb[0].mxu0
      %v2332 = vadd.f32 %v2267, %v2331
      %v2333 = vpop.f32.mrb[0].mxu0
      %v2334 = vpop.f32.mrb[0].mxu0
      %v2335 = vadd.f32 %v2270, %v2334
      %v2336 = vpop.f32.mrb[0].mxu0
      %2337 = vdwg.mxu0
      %v2338 = vadd.f32 %v1904, %v2308
      %v2339 = vadd.f32 %v1907, %v2311
      %v2340 = vadd.f32 %v1912, %v2316
      %v2341 = vadd.f32 %v1915, %v2319
      %v2342 = vadd.f32 %v1920, %v2324
      %v2343 = vadd.f32 %v1923, %v2327
      %v2344 = vadd.f32 %v1928, %v2332
      %v2345 = vadd.f32 %v1931, %v2335
      %v2346 = vld [vmem:[%s5] sm:$0x1]
      %v2348 = vlaneseq
      %v2349 = vshrl.u32 %v2348, 7
      %v2350 = vsub.s32 0, %v2349
      %v2351 = vrot.slane %v2346, %v2350
      %v2353 = vadd.f32 %v2338, %v2351
      %v2354 = vadd.f32 %v2339, %v2351
      %v2355 = vadd.f32 %v2340, %v2351
      %v2356 = vadd.f32 %v2341, %v2351
      %v2357 = vadd.f32 %v2342, %v2351
      %v2358 = vadd.f32 %v2343, %v2351
      %v2359 = vadd.f32 %v2344, %v2351
      %v2360 = vadd.f32 %v2345, %v2351
      %v2361 = vxor.u32 %v2353, 2147483648
      %v2362 = vxor.u32 %v2354, 2147483648
      %v2363 = vxor.u32 %v2355, 2147483648
      %v2364 = vxor.u32 %v2356, 2147483648
      %v2365 = vxor.u32 %v2357, 2147483648
      %v2366 = vxor.u32 %v2358, 2147483648
      %v2367 = vxor.u32 %v2359, 2147483648
      %v2368 = vxor.u32 %v2360, 2147483648
      %v2369 = vmul.f32 %v2361, 1.442695
      %v2370 = vpow.pop %v2369
      %v2371 = vmul.f32 %v2362, 1.442695
      %v2372 = vpow.pop %v2371
      %v2373 = vmul.f32 %v2363, 1.442695
      %v2374 = vpow.pop %v2373
      %v2375 = vmul.f32 %v2364, 1.442695
      %v2376 = vpow.pop %v2375
      %v2377 = vmul.f32 %v2365, 1.442695
      %v2378 = vpow.pop %v2377
      %v2379 = vmul.f32 %v2366, 1.442695
      %v2380 = vpow.pop %v2379
      %v2381 = vmul.f32 %v2367, 1.442695
      %v2382 = vpow.pop %v2381
      %v2383 = vmul.f32 %v2368, 1.442695
      %v2384 = vpow.pop %v2383
      %v2385 = vadd.f32 %v2370, 1.0
      %v2386 = vadd.f32 %v2372, 1.0
      %v2387 = vadd.f32 %v2374, 1.0
      %v2388 = vadd.f32 %v2376, 1.0
      %v2389 = vadd.f32 %v2378, 1.0
      %v2390 = vadd.f32 %v2380, 1.0
      %v2391 = vadd.f32 %v2382, 1.0
      %v2392 = vadd.f32 %v2384, 1.0
      %v2393 = vrcp.pop %v2385
      %v2394 = vmul.f32 1.0, %v2393
      %v2395 = vrcp.pop %v2386
      %v2396 = vmul.f32 1.0, %v2395
      %v2397 = vrcp.pop %v2387
      %v2398 = vmul.f32 1.0, %v2397
      %v2399 = vrcp.pop %v2388
      %v2400 = vmul.f32 1.0, %v2399
      %v2401 = vrcp.pop %v2389
      %v2402 = vmul.f32 1.0, %v2401
      %v2403 = vrcp.pop %v2390
      %v2404 = vmul.f32 1.0, %v2403
      %v2405 = vrcp.pop %v2391
      %v2406 = vmul.f32 1.0, %v2405
      %v2407 = vrcp.pop %v2392
      %v2408 = vmul.f32 1.0, %v2407
      %v2409 = vmul.f32 %v2353, %v2394
      %v2410 = vmul.f32 %v2354, %v2396
      %v2411 = vmul.f32 %v2355, %v2398
      %v2412 = vmul.f32 %v2356, %v2400
      %v2413 = vmul.f32 %v2357, %v2402
      %v2414 = vmul.f32 %v2358, %v2404
      %v2415 = vmul.f32 %v2359, %v2406
      %v2416 = vmul.f32 %v2360, %v2408
      %v2417 = vpack.c.bf16 %v2410, %v2409
      %v2418 = vpack.c.bf16 %v2412, %v2411
      %v2419 = vpack.c.bf16 %v2414, %v2413
      %v2420 = vpack.c.bf16 %v2416, %v2415
      %v2421 = vld [vmem:[%s6] sm:$0xff]
      %v2422 = vld [vmem:[%s6 + $0x8] sm:$0xff]
      %v2423 = vld [vmem:[%s6 + $0x10] sm:$0xff]
      %v2424 = vld [vmem:[%s6 + $0x18] sm:$0xff]
      %v2425 = vld [vmem:[%s6 + $0x20] sm:$0xff]
      %v2426 = vld [vmem:[%s6 + $0x28] sm:$0xff]
      %v2427 = vld [vmem:[%s6 + $0x30] sm:$0xff]
      %v2428 = vld [vmem:[%s6 + $0x38] sm:$0xff]
      %v2429 = vld [vmem:[%s6 + $0x40] sm:$0xff]
      %v2430 = vld [vmem:[%s6 + $0x48] sm:$0xff]
      %v2431 = vld [vmem:[%s6 + $0x50] sm:$0xff]
      %v2432 = vld [vmem:[%s6 + $0x58] sm:$0xff]
      %v2433 = vld [vmem:[%s6 + $0x60] sm:$0xff]
      %v2434 = vld [vmem:[%s6 + $0x68] sm:$0xff]
      %v2435 = vld [vmem:[%s6 + $0x70] sm:$0xff]
      %v2436 = vld [vmem:[%s6 + $0x78] sm:$0xff]
      %v2437 = vld [vmem:[%s6 + $0x80] sm:$0xff]
      %v2438 = vld [vmem:[%s6 + $0x88] sm:$0xff]
      %v2439 = vld [vmem:[%s6 + $0x90] sm:$0xff]
      %v2440 = vld [vmem:[%s6 + $0x98] sm:$0xff]
      %v2441 = vld [vmem:[%s6 + $0xa0] sm:$0xff]
      %v2442 = vld [vmem:[%s6 + $0xa8] sm:$0xff]
      %v2443 = vld [vmem:[%s6 + $0xb0] sm:$0xff]
      %v2444 = vld [vmem:[%s6 + $0xb8] sm:$0xff]
      %v2445 = vld [vmem:[%s6 + $0xc0] sm:$0xff]
      %v2446 = vld [vmem:[%s6 + $0xc8] sm:$0xff]
      %v2447 = vld [vmem:[%s6 + $0xd0] sm:$0xff]
      %v2448 = vld [vmem:[%s6 + $0xd8] sm:$0xff]
      %v2449 = vld [vmem:[%s6 + $0xe0] sm:$0xff]
      %v2450 = vld [vmem:[%s6 + $0xe8] sm:$0xff]
      %v2451 = vld [vmem:[%s6 + $0xf0] sm:$0xff]
      %v2452 = vld [vmem:[%s6 + $0xf8] sm:$0xff]
      %v2453 = vld [vmem:[%s7] sm:$0xf]
      %v2455 = vlaneseq
      %v2456 = vshrl.u32 %v2455, 7
      %v2457 = vsub.s32 0, %v2456
      %v2458 = vrot.slane %v2453, %v2457
      %v2459 = vlaneseq
      %v2460 = vshrl.u32 %v2459, 7
      %v2461 = vsub.s32 1, %v2460
      %v2462 = vrot.slane %v2453, %v2461
      %v2463 = vlaneseq
      %v2464 = vshrl.u32 %v2463, 7
      %v2465 = vsub.s32 2, %v2464
      %v2466 = vrot.slane %v2453, %v2465
      %v2467 = vlaneseq
      %v2468 = vshrl.u32 %v2467, 7
      %v2469 = vsub.s32 3, %v2468
      %v2470 = vrot.slane %v2453, %v2469
      %v2507 = vunpack.c.l.b16 %v2421
      %v2508 = vunpack.c.h.b16 %v2421
      %v2509 = vunpack.c.l.b16 %v2422
      %v2510 = vunpack.c.h.b16 %v2422
      %v2511 = vunpack.c.l.b16 %v2423
      %v2512 = vunpack.c.h.b16 %v2423
      %v2513 = vunpack.c.l.b16 %v2424
      %v2514 = vunpack.c.h.b16 %v2424
      %v2515 = vunpack.c.l.b16 %v2425
      %v2516 = vunpack.c.h.b16 %v2425
      %v2517 = vunpack.c.l.b16 %v2426
      %v2518 = vunpack.c.h.b16 %v2426
      %v2519 = vunpack.c.l.b16 %v2427
      %v2520 = vunpack.c.h.b16 %v2427
      %v2521 = vunpack.c.l.b16 %v2428
      %v2522 = vunpack.c.h.b16 %v2428
      %v2523 = vunpack.c.l.b16 %v2429
      %v2524 = vunpack.c.h.b16 %v2429
      %v2525 = vunpack.c.l.b16 %v2430
      %v2526 = vunpack.c.h.b16 %v2430
      %v2527 = vunpack.c.l.b16 %v2431
      %v2528 = vunpack.c.h.b16 %v2431
      %v2529 = vunpack.c.l.b16 %v2432
      %v2530 = vunpack.c.h.b16 %v2432
      %v2531 = vunpack.c.l.b16 %v2433
      %v2532 = vunpack.c.h.b16 %v2433
      %v2533 = vunpack.c.l.b16 %v2434
      %v2534 = vunpack.c.h.b16 %v2434
      %v2535 = vunpack.c.l.b16 %v2435
      %v2536 = vunpack.c.h.b16 %v2435
      %v2537 = vunpack.c.l.b16 %v2436
      %v2538 = vunpack.c.h.b16 %v2436
      %v2539 = vunpack.c.l.b16 %v2437
      %v2540 = vunpack.c.h.b16 %v2437
      %v2541 = vunpack.c.l.b16 %v2438
      %v2542 = vunpack.c.h.b16 %v2438
      %v2543 = vunpack.c.l.b16 %v2439
      %v2544 = vunpack.c.h.b16 %v2439
      %v2545 = vunpack.c.l.b16 %v2440
      %v2546 = vunpack.c.h.b16 %v2440
      %v2547 = vunpack.c.l.b16 %v2441
      %v2548 = vunpack.c.h.b16 %v2441
      %v2549 = vunpack.c.l.b16 %v2442
      %v2550 = vunpack.c.h.b16 %v2442
      %v2551 = vunpack.c.l.b16 %v2443
      %v2552 = vunpack.c.h.b16 %v2443
      %v2553 = vunpack.c.l.b16 %v2444
      %v2554 = vunpack.c.h.b16 %v2444
      %v2555 = vunpack.c.l.b16 %v2445
      %v2556 = vunpack.c.h.b16 %v2445
      %v2557 = vunpack.c.l.b16 %v2446
      %v2558 = vunpack.c.h.b16 %v2446
      %v2559 = vunpack.c.l.b16 %v2447
      %v2560 = vunpack.c.h.b16 %v2447
      %v2561 = vunpack.c.l.b16 %v2448
      %v2562 = vunpack.c.h.b16 %v2448
      %v2563 = vunpack.c.l.b16 %v2449
      %v2564 = vunpack.c.h.b16 %v2449
      %v2565 = vunpack.c.l.b16 %v2450
      %v2566 = vunpack.c.h.b16 %v2450
      %v2567 = vunpack.c.l.b16 %v2451
      %v2568 = vunpack.c.h.b16 %v2451
      %v2569 = vunpack.c.l.b16 %v2452
      %v2570 = vunpack.c.h.b16 %v2452
      %v2571 = vpack.c.b16 %v2511, %v2507
      %v2572 = vpack.c.b16 %v2512, %v2508
      %v2573 = vpack.c.b16 %v2513, %v2509
      %v2574 = vpack.c.b16 %v2514, %v2510
      %v2575 = vpack.c.b16 %v2519, %v2515
      %v2576 = vpack.c.b16 %v2520, %v2516
      %v2577 = vpack.c.b16 %v2521, %v2517
      %v2578 = vpack.c.b16 %v2522, %v2518
      %v2579 = vpack.c.b16 %v2527, %v2523
      %v2580 = vpack.c.b16 %v2528, %v2524
      %v2581 = vpack.c.b16 %v2529, %v2525
      %v2582 = vpack.c.b16 %v2530, %v2526
      %v2583 = vpack.c.b16 %v2535, %v2531
      %v2584 = vpack.c.b16 %v2536, %v2532
      %v2585 = vpack.c.b16 %v2537, %v2533
      %v2586 = vpack.c.b16 %v2538, %v2534
      %v2587 = vpack.c.b16 %v2543, %v2539
      %v2588 = vpack.c.b16 %v2544, %v2540
      %v2589 = vpack.c.b16 %v2545, %v2541
      %v2590 = vpack.c.b16 %v2546, %v2542
      %v2591 = vpack.c.b16 %v2551, %v2547
      %v2592 = vpack.c.b16 %v2552, %v2548
      %v2593 = vpack.c.b16 %v2553, %v2549
      %v2594 = vpack.c.b16 %v2554, %v2550
      %v2595 = vpack.c.b16 %v2559, %v2555
      %v2596 = vpack.c.b16 %v2560, %v2556
      %v2597 = vpack.c.b16 %v2561, %v2557
      %v2598 = vpack.c.b16 %v2562, %v2558
      %v2599 = vpack.c.b16 %v2567, %v2563
      %v2600 = vpack.c.b16 %v2568, %v2564
      %v2601 = vpack.c.b16 %v2569, %v2565
      %v2602 = vpack.c.b16 %v2570, %v2566
      %2635 = vmatprep.subr.bf16.mxu0 %v2572
      %2636 = vmatpush1.bf16.msra.mxu0 %v2571
      %2637 = vmatprep.subr.bf16.mxu0 %v2576
      %2638 = vmatpush1.bf16.msra.mxu0 %v2575
      %2639 = vmatprep.subr.bf16.mxu0 %v2580
      %2640 = vmatpush1.bf16.msra.mxu0 %v2579
      %2641 = vmatprep.subr.bf16.mxu0 %v2584
      %2642 = vmatpush1.bf16.msra.mxu0 %v2583
      %2643 = vmatprep.subr.bf16.mxu0 %v2588
      %2644 = vmatpush1.bf16.msra.mxu0 %v2587
      %2645 = vmatprep.subr.bf16.mxu0 %v2592
      %2646 = vmatpush1.bf16.msra.mxu0 %v2591
      %2647 = vmatprep.subr.bf16.mxu0 %v2596
      %2648 = vmatpush1.bf16.msra.mxu0 %v2595
      %2649 = vmatprep.subr.bf16.mxu0 %v2600
      %2650 = vmatpush1.bf16.msra.mxu0 %v2599
      %2651 = vmatprep.subr.bf16.mxu0 0
      %2652 = vmatpush1.bf16.msra.mxu0 0
      %2653 = vmatprep.subr.bf16.mxu0 0
      %2654 = vmatpush1.bf16.msra.mxu0 0
      %2655 = vmatprep.subr.bf16.mxu0 0
      %2656 = vmatpush1.bf16.msra.mxu0 0
      %2657 = vmatprep.subr.bf16.mxu0 0
      %2658 = vmatpush1.bf16.msra.mxu0 0
      %2659 = vmatprep.subr.bf16.mxu0 0
      %2660 = vmatpush1.bf16.msra.mxu0 0
      %2661 = vmatprep.subr.bf16.mxu0 0
      %2662 = vmatpush1.bf16.msra.mxu0 0
      %2663 = vmatprep.subr.bf16.mxu0 0
      %2664 = vmatpush1.bf16.msra.mxu0 0
      %2665 = vmatprep.subr.bf16.mxu0 0
      %2666 = vmatpush1.bf16.msra.mxu0 0
      %2667 = vmatprep.mubr.bf16.mxu0 0
      %2668 = vmatmul.mubr.bf16.gmra.mrb[0].mxu0 %v2417
      %v2669 = vpop.f32.mrb[0].mxu0
      %v2670 = vadd.f32 %v2458, %v2669
      %v2671 = vpop.f32.mrb[0].mxu0
      %v2672 = vadd.f32 %v2462, %v2671
      %v2673 = vpop.f32.mrb[0].mxu0
      %v2674 = vadd.f32 %v2458, %v2673
      %v2675 = vpop.f32.mrb[0].mxu0
      %v2676 = vadd.f32 %v2462, %v2675
      %2677 = vmatprep.mubr.bf16.mxu0 0
      %2678 = vmatmul.mubr.bf16.gmra.mrb[0].mxu0 %v2418
      %v2679 = vpop.f32.mrb[0].mxu0
      %v2680 = vadd.f32 %v2458, %v2679
      %v2681 = vpop.f32.mrb[0].mxu0
      %v2682 = vadd.f32 %v2462, %v2681
      %v2683 = vpop.f32.mrb[0].mxu0
      %v2684 = vadd.f32 %v2458, %v2683
      %v2685 = vpop.f32.mrb[0].mxu0
      %v2686 = vadd.f32 %v2462, %v2685
      %2687 = vmatprep.mubr.bf16.mxu0 0
      %2688 = vmatmul.mubr.bf16.gmra.mrb[0].mxu0 %v2419
      %v2689 = vpop.f32.mrb[0].mxu0
      %v2690 = vadd.f32 %v2458, %v2689
      %v2691 = vpop.f32.mrb[0].mxu0
      %v2692 = vadd.f32 %v2462, %v2691
      %v2693 = vpop.f32.mrb[0].mxu0
      %v2694 = vadd.f32 %v2458, %v2693
      %v2695 = vpop.f32.mrb[0].mxu0
      %v2696 = vadd.f32 %v2462, %v2695
      %2697 = vmatprep.mubr.bf16.mxu0 0
      %2698 = vmatmul.mubr.bf16.gmra.mrb[0].mxu0 %v2420
      %v2699 = vpop.f32.mrb[0].mxu0
      %v2700 = vadd.f32 %v2458, %v2699
      %v2701 = vpop.f32.mrb[0].mxu0
      %v2702 = vadd.f32 %v2462, %v2701
      %v2703 = vpop.f32.mrb[0].mxu0
      %v2704 = vadd.f32 %v2458, %v2703
      %v2705 = vpop.f32.mrb[0].mxu0
      %v2706 = vadd.f32 %v2462, %v2705
      %2707 = vdwg.mxu0
      %2708 = vmatprep.subr.bf16.mxu0 %v2574
      %2709 = vmatpush1.bf16.msra.mxu0 %v2573
      %2710 = vmatprep.subr.bf16.mxu0 %v2578
      %2711 = vmatpush1.bf16.msra.mxu0 %v2577
      %2712 = vmatprep.subr.bf16.mxu0 %v2582
      %2713 = vmatpush1.bf16.msra.mxu0 %v2581
      %2714 = vmatprep.subr.bf16.mxu0 %v2586
      %2715 = vmatpush1.bf16.msra.mxu0 %v2585
      %2716 = vmatprep.subr.bf16.mxu0 %v2590
      %2717 = vmatpush1.bf16.msra.mxu0 %v2589
      %2718 = vmatprep.subr.bf16.mxu0 %v2594
      %2719 = vmatpush1.bf16.msra.mxu0 %v2593
      %2720 = vmatprep.subr.bf16.mxu0 %v2598
      %2721 = vmatpush1.bf16.msra.mxu0 %v2597
      %2722 = vmatprep.subr.bf16.mxu0 %v2602
      %2723 = vmatpush1.bf16.msra.mxu0 %v2601
      %2724 = vmatprep.subr.bf16.mxu0 0
      %2725 = vmatpush1.bf16.msra.mxu0 0
      %2726 = vmatprep.subr.bf16.mxu0 0
      %2727 = vmatpush1.bf16.msra.mxu0 0
      %2728 = vmatprep.subr.bf16.mxu0 0
      %2729 = vmatpush1.bf16.msra.mxu0 0
      %2730 = vmatprep.subr.bf16.mxu0 0
      %2731 = vmatpush1.bf16.msra.mxu0 0
      %2732 = vmatprep.subr.bf16.mxu0 0
      %2733 = vmatpush1.bf16.msra.mxu0 0
      %2734 = vmatprep.subr.bf16.mxu0 0
      %2735 = vmatpush1.bf16.msra.mxu0 0
      %2736 = vmatprep.subr.bf16.mxu0 0
      %2737 = vmatpush1.bf16.msra.mxu0 0
      %2738 = vmatprep.subr.bf16.mxu0 0
      %2739 = vmatpush1.bf16.msra.mxu0 0
      %2740 = vmatprep.mubr.bf16.mxu0 0
      %2741 = vmatmul.mubr.bf16.gmra.mrb[0].mxu0 %v2417
      %v2742 = vpop.f32.mrb[0].mxu0
      %v2743 = vadd.f32 %v2466, %v2742
      %v2744 = vpop.f32.mrb[0].mxu0
      %v2745 = vadd.f32 %v2470, %v2744
      %v2746 = vpop.f32.mrb[0].mxu0
      %v2747 = vadd.f32 %v2466, %v2746
      %v2748 = vpop.f32.mrb[0].mxu0
      %v2749 = vadd.f32 %v2470, %v2748
      %2750 = vmatprep.mubr.bf16.mxu0 0
      %2751 = vmatmul.mubr.bf16.gmra.mrb[0].mxu0 %v2418
      %v2752 = vpop.f32.mrb[0].mxu0
      %v2753 = vadd.f32 %v2466, %v2752
      %v2754 = vpop.f32.mrb[0].mxu0
      %v2755 = vadd.f32 %v2470, %v2754
      %v2756 = vpop.f32.mrb[0].mxu0
      %v2757 = vadd.f32 %v2466, %v2756
      %v2758 = vpop.f32.mrb[0].mxu0
      %v2759 = vadd.f32 %v2470, %v2758
      %2760 = vmatprep.mubr.bf16.mxu0 0
      %2761 = vmatmul.mubr.bf16.gmra.mrb[0].mxu0 %v2419
      %v2762 = vpop.f32.mrb[0].mxu0
      %v2763 = vadd.f32 %v2466, %v2762
      %v2764 = vpop.f32.mrb[0].mxu0
      %v2765 = vadd.f32 %v2470, %v2764
      %v2766 = vpop.f32.mrb[0].mxu0
      %v2767 = vadd.f32 %v2466, %v2766
      %v2768 = vpop.f32.mrb[0].mxu0
      %v2769 = vadd.f32 %v2470, %v2768
      %2770 = vmatprep.mubr.bf16.mxu0 0
      %2771 = vmatmul.mubr.bf16.gmra.mrb[0].mxu0 %v2420
      %v2772 = vpop.f32.mrb[0].mxu0
      %v2773 = vadd.f32 %v2466, %v2772
      %v2774 = vpop.f32.mrb[0].mxu0
      %v2775 = vadd.f32 %v2470, %v2774
      %v2776 = vpop.f32.mrb[0].mxu0
      %v2777 = vadd.f32 %v2466, %v2776
      %v2778 = vpop.f32.mrb[0].mxu0
      %v2779 = vadd.f32 %v2470, %v2778
      %2780 = vdwg.mxu0
      %v2781 = vpack.c.bf16 %v2670, %v2670
      %v2782 = vpack.c.bf16 %v2672, %v2672
      %v2783 = vpack.c.bf16 %v2743, %v2743
      %v2784 = vpack.c.bf16 %v2745, %v2745
      %v2785 = vpack.c.bf16 %v2674, %v2674
      %v2786 = vpack.c.bf16 %v2676, %v2676
      %v2787 = vpack.c.bf16 %v2747, %v2747
      %v2788 = vpack.c.bf16 %v2749, %v2749
      %v2789 = vpack.c.bf16 %v2680, %v2680
      %v2790 = vpack.c.bf16 %v2682, %v2682
      %v2791 = vpack.c.bf16 %v2753, %v2753
      %v2792 = vpack.c.bf16 %v2755, %v2755
      %v2793 = vpack.c.bf16 %v2684, %v2684
      %v2794 = vpack.c.bf16 %v2686, %v2686
      %v2795 = vpack.c.bf16 %v2757, %v2757
      %v2796 = vpack.c.bf16 %v2759, %v2759
      %v2797 = vpack.c.bf16 %v2690, %v2690
      %v2798 = vpack.c.bf16 %v2692, %v2692
      %v2799 = vpack.c.bf16 %v2763, %v2763
      %v2800 = vpack.c.bf16 %v2765, %v2765
      %v2801 = vpack.c.bf16 %v2694, %v2694
      %v2802 = vpack.c.bf16 %v2696, %v2696
      %v2803 = vpack.c.bf16 %v2767, %v2767
      %v2804 = vpack.c.bf16 %v2769, %v2769
      %v2805 = vpack.c.bf16 %v2700, %v2700
      %v2806 = vpack.c.bf16 %v2702, %v2702
      %v2807 = vpack.c.bf16 %v2773, %v2773
      %v2808 = vpack.c.bf16 %v2775, %v2775
      %v2809 = vpack.c.bf16 %v2704, %v2704
      %v2810 = vpack.c.bf16 %v2706, %v2706
      %v2811 = vpack.c.bf16 %v2777, %v2777
      %v2812 = vpack.c.bf16 %v2779, %v2779
      %v2845 = vunpack.c.l.b16 %v2781
      %v2846 = vunpack.c.l.b16 %v2782
      %v2847 = vunpack.c.l.b16 %v2783
      %v2848 = vunpack.c.l.b16 %v2784
      %v2849 = vunpack.c.l.b16 %v2785
      %v2850 = vunpack.c.l.b16 %v2786
      %v2851 = vunpack.c.l.b16 %v2787
      %v2852 = vunpack.c.l.b16 %v2788
      %v2853 = vunpack.c.l.b16 %v2789
      %v2854 = vunpack.c.l.b16 %v2790
      %v2855 = vunpack.c.l.b16 %v2791
      %v2856 = vunpack.c.l.b16 %v2792
      %v2857 = vunpack.c.l.b16 %v2793
      %v2858 = vunpack.c.l.b16 %v2794
      %v2859 = vunpack.c.l.b16 %v2795
      %v2860 = vunpack.c.l.b16 %v2796
      %v2861 = vunpack.c.l.b16 %v2797
      %v2862 = vunpack.c.l.b16 %v2798
      %v2863 = vunpack.c.l.b16 %v2799
      %v2864 = vunpack.c.l.b16 %v2800
      %v2865 = vunpack.c.l.b16 %v2801
      %v2866 = vunpack.c.l.b16 %v2802
      %v2867 = vunpack.c.l.b16 %v2803
      %v2868 = vunpack.c.l.b16 %v2804
      %v2869 = vunpack.c.l.b16 %v2805
      %v2870 = vunpack.c.l.b16 %v2806
      %v2871 = vunpack.c.l.b16 %v2807
      %v2872 = vunpack.c.l.b16 %v2808
      %v2873 = vunpack.c.l.b16 %v2809
      %v2874 = vunpack.c.l.b16 %v2810
      %v2875 = vunpack.c.l.b16 %v2811
      %v2876 = vunpack.c.l.b16 %v2812
      %v2877 = vpack.c.b16 %v2846, %v2845
      %v2878 = vpack.c.b16 %v2848, %v2847
      %v2879 = vpack.c.b16 %v2850, %v2849
      %v2880 = vpack.c.b16 %v2852, %v2851
      %v2881 = vpack.c.b16 %v2854, %v2853
      %v2882 = vpack.c.b16 %v2856, %v2855
      %v2883 = vpack.c.b16 %v2858, %v2857
      %v2884 = vpack.c.b16 %v2860, %v2859
      %v2885 = vpack.c.b16 %v2862, %v2861
      %v2886 = vpack.c.b16 %v2864, %v2863
      %v2887 = vpack.c.b16 %v2866, %v2865
      %v2888 = vpack.c.b16 %v2868, %v2867
      %v2889 = vpack.c.b16 %v2870, %v2869
      %v2890 = vpack.c.b16 %v2872, %v2871
      %v2891 = vpack.c.b16 %v2874, %v2873
      %v2892 = vpack.c.b16 %v2876, %v2875
      %2909 = vst [vmem:[%s325] sm:$0xff] %v2877
      %2910 = vst [vmem:[%s325 + $0x8] sm:$0xff] %v2878
      %2911 = vst [vmem:[%s325 + $0x10] sm:$0xff] %v2879
      %2912 = vst [vmem:[%s325 + $0x18] sm:$0xff] %v2880
      %2913 = vst [vmem:[%s325 + $0x20] sm:$0xff] %v2881
      %2914 = vst [vmem:[%s325 + $0x28] sm:$0xff] %v2882
      %2915 = vst [vmem:[%s325 + $0x30] sm:$0xff] %v2883
      %2916 = vst [vmem:[%s325 + $0x38] sm:$0xff] %v2884
      %2917 = vst [vmem:[%s325 + $0x40] sm:$0xff] %v2885
      %2918 = vst [vmem:[%s325 + $0x48] sm:$0xff] %v2886
      %2919 = vst [vmem:[%s325 + $0x50] sm:$0xff] %v2887
      %2920 = vst [vmem:[%s325 + $0x58] sm:$0xff] %v2888
      %2921 = vst [vmem:[%s325 + $0x60] sm:$0xff] %v2889
      %2922 = vst [vmem:[%s325 + $0x68] sm:$0xff] %v2890
      %2923 = vst [vmem:[%s325 + $0x70] sm:$0xff] %v2891
      %2924 = vst [vmem:[%s325 + $0x78] sm:$0xff] %v2892
      %p2925 = scmp.lt.s32.totalorder %s19, 7
      %s2926 = scalar_select %p2925, %s19, 7
      %s2927 = smul.addr %s2926, 32
      %s2928 = smul.addr %s2927, 4
      %s2929 = scalar_lea.vmem %s8, %s2928
      // Predicated region
      $region53: #{modulator_forward.1} parent=51 // pred_check
        %p2930 = pneg %p215
      $region54: #{modulator_forward.1} parent=51 // pred_check_branch
        %2932 = sbr.rel (%p2930) target = $region56
      $region55: #{modulator_forward.1} parent=51 // pred_region
        _
      $region56: #{modulator_forward.1} parent=51 // pred_fallthru
        _
    $region52: #{modulator_forward.1} parent=5 // pred_fallthru
      _
    %p2933 = scmp.le.s32.totalorder 2, %s14
    // Predicated region
    $region57: #{modulator_forward.1} parent=5 // pred_check
      %p2934 = pneg %p2933
    $region58: #{modulator_forward.1} parent=5 // pred_check_branch
      %2936 = sbr.rel (%p2934) target = $region60
    $region59: #{modulator_forward.1} parent=5 // pred_region
      %s2937 = ssub.s32 %s14, 2
      // Predicated region
      $region61: #{modulator_forward.1} parent=59 // pred_check
        %p2938 = pneg %p221
      $region62: #{modulator_forward.1} parent=59 // pred_check_branch
        %2940 = sbr.rel (%p2938) target = $region64
      $region63: #{modulator_forward.1} parent=59 // pred_region
        %p2941 = scmp.lt.s32.totalorder %s20, 7
        %s2942 = scalar_select %p2941, %s20, 7
        %s2943 = smul.addr %s2942, 32
        %s2944 = smul.addr %s2943, 4
        %s2945 = scalar_lea.vmem %s8, %s2944
      $region64: #{modulator_forward.1} parent=59 // pred_fallthru
        _
    $region60: #{modulator_forward.1} parent=5 // pred_fallthru
      _
  $region6: #{modulator_forward.1} parent=0 // loop_footer
    %s18 = sadd.s32 1, %s14
  $region7: #{modulator_forward.1} parent=0 // loop_footer_branch
    %13 = sbr.rel target = $region3
  $region8: #{modulator_forward.1} parent=0 // loop_exit
    _

</llo_original>
